<compile_context>
chip_gen: v7x
topology: tpu7x:2x2x1
jax: 0.10.0
libtpu: 0.0.40
codegen_flags: <defaults>
</compile_context>

<pallas_src>
import jax
import jax.numpy as jnp
import numpy as np
from jax.experimental import pallas as pl
from jax.experimental.pallas import tpu as pltpu


def lstm_fc_kernel(x_ref, w_ih_ref, w_hh_ref, b_ref, fc_w_ref, fc_b_ref,
                   out_ref, gin_ref):
    # x_ref    : (T, Bt, 1)   f32   timestep-major input slab for this batch tile
    # w_ih_ref : (1, 4H)      f32   weight_ih_l0.T (input_size == 1)
    # w_hh_ref : (H, 4H)      f32   weight_hh_l0.T
    # b_ref    : (1, 4H)      f32   bias_ih_l0 + bias_hh_l0
    # fc_w_ref : (O, H)       f32   fc.weight
    # fc_b_ref : (O, 1)       f32   fc.bias
    # out_ref  : (O, Bt)      f32   lane-dense output (batch on the lane axis)
    # gin_ref  : (T, Bt, 4H)  f32   VMEM scratch: hoisted input projection
    T, Bt, _ = x_ref.shape
    H = w_hh_ref.shape[0]

    # Hoist input projection + bias out of the recurrence (single wide VPU op,
    # off the serial critical path):  gin[t, b, :] = x[t, b] * W_ih + (b_ih + b_hh)
    gin_ref[...] = x_ref[...] * w_ih_ref[...][None, :, :] + b_ref[...][None, :, :]

    w_hh = w_hh_ref[...]
    h0 = jnp.zeros((Bt, H), jnp.float32)
    c0 = jnp.zeros((Bt, H), jnp.float32)

    def step(t, carry):
        h, c = carry
        # Per-step body: one MXU matmul + full-width (4H = 128 lane) activations.
        gates = gin_ref[t] + jnp.dot(h, w_hh, preferred_element_type=jnp.float32)
        sg = jax.nn.sigmoid(gates)           # full-width EUP launch
        tg = jnp.tanh(gates)                 # full-width EUP launch
        i = sg[:, 0 * H:1 * H]               # PyTorch gate order [i, f, g, o]
        f = sg[:, 1 * H:2 * H]
        g = tg[:, 2 * H:3 * H]
        o = sg[:, 3 * H:4 * H]
        c = f * c + i * g
        h = o * jnp.tanh(c)
        return h, c

    if T <= 32:
        # Small T: trace-time unroll keeps every gin_ref[t] read a static slice.
        h, c = h0, c0
        for t in range(T):
            h, c = step(t, (h, c))
    else:
        # Longer sequences: rolled loop so live ranges stay bounded (no vreg spills).
        h, c = jax.lax.fori_loop(0, T, step, (h0, c0))

    # Epilogue: lane-dense (O, Bt) store; single trans-B dot contracting H.
    out_ref[...] = (
        jax.lax.dot_general(fc_w_ref[...], h, (((1,), (1,)), ((), ())),
                            preferred_element_type=jnp.float32)
        + fc_b_ref[...]
    )


def lstm_forward(x, params):
    """x: (B, T) float32 -> (B, num_outputs) float32."""
    w_ih_row, w_hh_t, b_row, fc_w, fc_b_col = params
    B, T = x.shape
    H = w_hh_t.shape[0]
    num_out = fc_w.shape[0]

    # Batch tile: <=128 rows -> one block covering the (sublane-padded) batch;
    # larger batches -> 128-wide tiles over a parallel grid (fills the MXU and,
    # on v7x, both TensorCores).  The tile also bounds the gin scratch size.
    if B <= 128:
        padded_b = max(8, ((B + 7) // 8) * 8)
        b_tile = padded_b
    else:
        padded_b = ((B + 127) // 128) * 128
        b_tile = 128
    grid = (padded_b // b_tile,)

    # Layout plumbing only: (B, T) -> (T, padded_B, 1) so each per-step scalar
    # broadcasts across the 4H gate lanes in-kernel without a relayout.
    xp = jnp.zeros((padded_b, T), x.dtype).at[:B, :].set(x)
    x_k = xp.T[:, :, None]                                    # (T, padded_B, 1)

    out = pl.pallas_call(
        lstm_fc_kernel,
        out_shape=jax.ShapeDtypeStruct((num_out, padded_b), jnp.float32),
        grid=grid,
        in_specs=[
            pl.BlockSpec((T, b_tile, 1), lambda i: (0, i, 0)),    # x batch tile
            pl.BlockSpec((1, 4 * H), lambda i: (0, 0)),           # W_ih  (VMEM-resident)
            pl.BlockSpec((H, 4 * H), lambda i: (0, 0)),           # W_hh  (VMEM-resident)
            pl.BlockSpec((1, 4 * H), lambda i: (0, 0)),           # bias  (VMEM-resident)
            pl.BlockSpec((num_out, H), lambda i: (0, 0)),         # fc.weight
            pl.BlockSpec((num_out, 1), lambda i: (0, 0)),         # fc.bias
        ],
        out_specs=pl.BlockSpec((num_out, b_tile), lambda i: (0, i)),
        scratch_shapes=[pltpu.VMEM((T, b_tile, 4 * H), jnp.float32)],
        compiler_params=pltpu.CompilerParams(
            dimension_semantics=("parallel",)),
    )(x_k, w_ih_row, w_hh_t, b_row, fc_w, fc_b_col)

    return out[:, :B].T                                       # (B, num_outputs)


def init_params(key, num_hiddens, num_outputs):
    """Deterministic synthetic init matching nn.LSTM/nn.Linear parameter shapes."""
    H = num_hiddens
    k = 1.0 / np.sqrt(H)
    ks = jax.random.split(key, 6)
    weight_ih = jax.random.uniform(ks[0], (4 * H, 1), jnp.float32, -k, k)   # (4H, 1)
    weight_hh = jax.random.uniform(ks[1], (4 * H, H), jnp.float32, -k, k)   # (4H, H)
    bias_ih = jax.random.uniform(ks[2], (4 * H,), jnp.float32, -k, k)
    bias_hh = jax.random.uniform(ks[3], (4 * H,), jnp.float32, -k, k)
    fc_w = jax.random.uniform(ks[4], (num_outputs, H), jnp.float32, -k, k)  # (O, H)
    fc_b = jax.random.uniform(ks[5], (num_outputs,), jnp.float32, -k, k)

    # Kernel-side layouts (PyTorch gate order [i, f, g, o] preserved).
    w_ih_row = weight_ih.T                                  # (1, 4H)
    w_hh_t = weight_hh.T                                    # (H, 4H)
    b_row = (bias_ih + bias_hh).reshape(1, 4 * H)           # (1, 4H)
    fc_b_col = fc_b.reshape(num_outputs, 1)                 # (O, 1)
    return (w_ih_row, w_hh_t, b_row, fc_w, fc_b_col)


def lstm_forward_ref(x, params):
    """Pure-JAX reference of the PyTorch forward (for verification)."""
    w_ih_row, w_hh_t, b_row, fc_w, fc_b_col = params
    B, T = x.shape
    H = w_hh_t.shape[0]
    h = jnp.zeros((B, H), jnp.float32)
    c = jnp.zeros((B, H), jnp.float32)
    for t in range(T):
        gates = x[:, t:t + 1] * w_ih_row + h @ w_hh_t + b_row
        i = jax.nn.sigmoid(gates[:, 0 * H:1 * H])
        f = jax.nn.sigmoid(gates[:, 1 * H:2 * H])
        g = jnp.tanh(gates[:, 2 * H:3 * H])
        o = jax.nn.sigmoid(gates[:, 3 * H:4 * H])
        c = f * c + i * g
        h = o * jnp.tanh(c)
    return h @ fc_w.T + fc_b_col.T


if __name__ == "__main__":
    num_hiddens = 32
    num_outputs = 1
    batch = 2
    seq = 16

    key = jax.random.PRNGKey(0)
    kx, kp = jax.random.split(key)
    x = jax.random.normal(kx, (batch, seq), jnp.float32)
    params = init_params(kp, num_hiddens, num_outputs)

    out = lstm_forward(x, params)
    out = jax.block_until_ready(out)

    ref = lstm_forward_ref(x, params)
    np.testing.assert_allclose(np.asarray(out), np.asarray(ref), rtol=1e-5, atol=1e-5)

    assert out.shape == (batch, num_outputs)
    print("KERNEL_OK")
</pallas_src>

<mosaic_0001>
module attributes {stable_mosaic.version = 11 : i64} {
  func.func @lstm_fc_kernel(%arg0: i32, %arg1: memref<16x8x1xf32, #tpu.memory_space<vmem>>, %arg2: memref<1x128xf32, #tpu.memory_space<vmem>>, %arg3: memref<32x128xf32, #tpu.memory_space<vmem>>, %arg4: memref<1x128xf32, #tpu.memory_space<vmem>>, %arg5: memref<1x32xf32, #tpu.memory_space<vmem>>, %arg6: memref<1x1xf32, #tpu.memory_space<vmem>>, %arg7: memref<1x8xf32, #tpu.memory_space<vmem>>, %arg8: memref<16x8x128xf32, #tpu.memory_space<vmem>>) attributes {dimension_semantics = [#tpu.dimension_semantics<parallel>], iteration_bounds = array<i64: 1>, scalar_prefetch = 0 : i64, scratch_operands = 1 : i64, tpu.core_type = #tpu.core_type<tc>, window_params = [{transform_indices = @transform_0, window_bounds = array<i64: 16, 8, 1>}, {pipeline_mode = #tpu.pipeline_mode<synchronous>, transform_indices = @transform_1, window_bounds = array<i64: 1, 128>}, {pipeline_mode = #tpu.pipeline_mode<synchronous>, transform_indices = @transform_2, window_bounds = array<i64: 32, 128>}, {pipeline_mode = #tpu.pipeline_mode<synchronous>, transform_indices = @transform_3, window_bounds = array<i64: 1, 128>}, {pipeline_mode = #tpu.pipeline_mode<synchronous>, transform_indices = @transform_4, window_bounds = array<i64: 1, 32>}, {pipeline_mode = #tpu.pipeline_mode<synchronous>, transform_indices = @transform_5, window_bounds = array<i64: 1, 1>}, {transform_indices = @transform_6, window_bounds = array<i64: 1, 8>}]} {
    %c0 = arith.constant 0 : index
    %c0_0 = arith.constant 0 : index
    %c0_1 = arith.constant 0 : index
    %0 = vector.load %arg1[%c0, %c0_0, %c0_1] : memref<16x8x1xf32, #tpu.memory_space<vmem>>, vector<16x8x1xf32>
    %c0_2 = arith.constant 0 : index
    %c0_3 = arith.constant 0 : index
    %1 = vector.load %arg2[%c0_2, %c0_3] : memref<1x128xf32, #tpu.memory_space<vmem>>, vector<1x128xf32>
    %2 = vector.shape_cast %1 : vector<1x128xf32> to vector<1x1x128xf32>
    %3 = vector.broadcast %0 : vector<16x8x1xf32> to vector<16x8x128xf32>
    %4 = vector.broadcast %2 : vector<1x1x128xf32> to vector<16x8x128xf32>
    %5 = arith.mulf %3, %4 : vector<16x8x128xf32>
    %c0_4 = arith.constant 0 : index
    %c0_5 = arith.constant 0 : index
    %6 = vector.load %arg4[%c0_4, %c0_5] : memref<1x128xf32, #tpu.memory_space<vmem>>, vector<1x128xf32>
    %7 = vector.shape_cast %6 : vector<1x128xf32> to vector<1x1x128xf32>
    %8 = vector.broadcast %7 : vector<1x1x128xf32> to vector<16x8x128xf32>
    %9 = arith.addf %5, %8 : vector<16x8x128xf32>
    %c0_6 = arith.constant 0 : index
    %c0_7 = arith.constant 0 : index
    %c0_8 = arith.constant 0 : index
    %10 = vector.load %arg8[%c0_6, %c0_7, %c0_8] : memref<16x8x128xf32, #tpu.memory_space<vmem>>, vector<16x8x128xf32>
    tpu.vector_store %arg8[%c0_6, %c0_7, %c0_8], %9 {strides = array<i32>} : memref<16x8x128xf32, #tpu.memory_space<vmem>>, vector<16x8x128xf32>,
    %c0_9 = arith.constant 0 : index
    %c0_10 = arith.constant 0 : index
    %11 = vector.load %arg3[%c0_9, %c0_10] : memref<32x128xf32, #tpu.memory_space<vmem>>, vector<32x128xf32>
    %cst = arith.constant 0.000000e+00 : f32
    %12 = vector.broadcast %cst : f32 to vector<8x32xf32>
    %cst_11 = arith.constant 0.000000e+00 : f32
    %13 = vector.broadcast %cst_11 : f32 to vector<8x32xf32>
    %c0_12 = arith.constant 0 : index
    %c0_13 = arith.constant 0 : index
    %c0_14 = arith.constant 0 : index
    %14 = vector.load %arg8[%c0_12, %c0_13, %c0_14] : memref<16x8x128xf32, #tpu.memory_space<vmem>>, vector<1x8x128xf32>
    %15 = vector.shape_cast %14 : vector<1x8x128xf32> to vector<8x128xf32>
    %cst_15 = arith.constant dense<0.000000e+00> : vector<8x128xf32>
    %16 = tpu.matmul %12, %11, %cst_15 {dimension_numbers = #tpu.dot_dimension_numbers<[1], [0], [0], [1], [0, 0, 1, 1], [], []>} : vector<8x32xf32>, vector<32x128xf32>, vector<8x128xf32> -> vector<8x128xf32>
    %17 = arith.addf %15, %16 : vector<8x128xf32>
    %18 = arith.negf %17 : vector<8x128xf32>
    %19 = math.exp %18 : vector<8x128xf32>
    %cst_16 = arith.constant 1.000000e+00 : f32
    %20 = vector.broadcast %cst_16 : f32 to vector<8x128xf32>
    %21 = arith.addf %20, %19 : vector<8x128xf32>
    %22 = arith.divf %20, %21 : vector<8x128xf32>
    %23 = math.tanh %17 : vector<8x128xf32>
    %24 = vector.extract_strided_slice %22 {offsets = [0, 0], sizes = [8, 32], strides = [1, 1]} : vector<8x128xf32> to vector<8x32xf32>
    %25 = vector.extract_strided_slice %22 {offsets = [0, 32], sizes = [8, 32], strides = [1, 1]} : vector<8x128xf32> to vector<8x32xf32>
    %26 = vector.extract_strided_slice %23 {offsets = [0, 64], sizes = [8, 32], strides = [1, 1]} : vector<8x128xf32> to vector<8x32xf32>
    %27 = vector.extract_strided_slice %22 {offsets = [0, 96], sizes = [8, 32], strides = [1, 1]} : vector<8x128xf32> to vector<8x32xf32>
    %28 = arith.mulf %25, %13 : vector<8x32xf32>
    %29 = arith.mulf %24, %26 : vector<8x32xf32>
    %30 = arith.addf %28, %29 : vector<8x32xf32>
    %31 = math.tanh %30 : vector<8x32xf32>
    %32 = arith.mulf %27, %31 : vector<8x32xf32>
    %c1 = arith.constant 1 : index
    %c0_17 = arith.constant 0 : index
    %c0_18 = arith.constant 0 : index
    %33 = vector.load %arg8[%c1, %c0_17, %c0_18] : memref<16x8x128xf32, #tpu.memory_space<vmem>>, vector<1x8x128xf32>
    %34 = vector.shape_cast %33 : vector<1x8x128xf32> to vector<8x128xf32>
    %cst_19 = arith.constant dense<0.000000e+00> : vector<8x128xf32>
    %35 = tpu.matmul %32, %11, %cst_19 {dimension_numbers = #tpu.dot_dimension_numbers<[1], [0], [0], [1], [0, 0, 1, 1], [], []>} : vector<8x32xf32>, vector<32x128xf32>, vector<8x128xf32> -> vector<8x128xf32>
    %36 = arith.addf %34, %35 : vector<8x128xf32>
    %37 = arith.negf %36 : vector<8x128xf32>
    %38 = math.exp %37 : vector<8x128xf32>
    %cst_20 = arith.constant 1.000000e+00 : f32
    %39 = vector.broadcast %cst_20 : f32 to vector<8x128xf32>
    %40 = arith.addf %39, %38 : vector<8x128xf32>
    %41 = arith.divf %39, %40 : vector<8x128xf32>
    %42 = math.tanh %36 : vector<8x128xf32>
    %43 = vector.extract_strided_slice %41 {offsets = [0, 0], sizes = [8, 32], strides = [1, 1]} : vector<8x128xf32> to vector<8x32xf32>
    %44 = vector.extract_strided_slice %41 {offsets = [0, 32], sizes = [8, 32], strides = [1, 1]} : vector<8x128xf32> to vector<8x32xf32>
    %45 = vector.extract_strided_slice %42 {offsets = [0, 64], sizes = [8, 32], strides = [1, 1]} : vector<8x128xf32> to vector<8x32xf32>
    %46 = vector.extract_strided_slice %41 {offsets = [0, 96], sizes = [8, 32], strides = [1, 1]} : vector<8x128xf32> to vector<8x32xf32>
    %47 = arith.mulf %44, %30 : vector<8x32xf32>
    %48 = arith.mulf %43, %45 : vector<8x32xf32>
    %49 = arith.addf %47, %48 : vector<8x32xf32>
    %50 = math.tanh %49 : vector<8x32xf32>
    %51 = arith.mulf %46, %50 : vector<8x32xf32>
    %c2 = arith.constant 2 : index
    %c0_21 = arith.constant 0 : index
    %c0_22 = arith.constant 0 : index
    %52 = vector.load %arg8[%c2, %c0_21, %c0_22] : memref<16x8x128xf32, #tpu.memory_space<vmem>>, vector<1x8x128xf32>
    %53 = vector.shape_cast %52 : vector<1x8x128xf32> to vector<8x128xf32>
    %cst_23 = arith.constant dense<0.000000e+00> : vector<8x128xf32>
    %54 = tpu.matmul %51, %11, %cst_23 {dimension_numbers = #tpu.dot_dimension_numbers<[1], [0], [0], [1], [0, 0, 1, 1], [], []>} : vector<8x32xf32>, vector<32x128xf32>, vector<8x128xf32> -> vector<8x128xf32>
    %55 = arith.addf %53, %54 : vector<8x128xf32>
    %56 = arith.negf %55 : vector<8x128xf32>
    %57 = math.exp %56 : vector<8x128xf32>
    %cst_24 = arith.constant 1.000000e+00 : f32
    %58 = vector.broadcast %cst_24 : f32 to vector<8x128xf32>
    %59 = arith.addf %58, %57 : vector<8x128xf32>
    %60 = arith.divf %58, %59 : vector<8x128xf32>
    %61 = math.tanh %55 : vector<8x128xf32>
    %62 = vector.extract_strided_slice %60 {offsets = [0, 0], sizes = [8, 32], strides = [1, 1]} : vector<8x128xf32> to vector<8x32xf32>
    %63 = vector.extract_strided_slice %60 {offsets = [0, 32], sizes = [8, 32], strides = [1, 1]} : vector<8x128xf32> to vector<8x32xf32>
    %64 = vector.extract_strided_slice %61 {offsets = [0, 64], sizes = [8, 32], strides = [1, 1]} : vector<8x128xf32> to vector<8x32xf32>
    %65 = vector.extract_strided_slice %60 {offsets = [0, 96], sizes = [8, 32], strides = [1, 1]} : vector<8x128xf32> to vector<8x32xf32>
    %66 = arith.mulf %63, %49 : vector<8x32xf32>
    %67 = arith.mulf %62, %64 : vector<8x32xf32>
    %68 = arith.addf %66, %67 : vector<8x32xf32>
    %69 = math.tanh %68 : vector<8x32xf32>
    %70 = arith.mulf %65, %69 : vector<8x32xf32>
    %c3 = arith.constant 3 : index
    %c0_25 = arith.constant 0 : index
    %c0_26 = arith.constant 0 : index
    %71 = vector.load %arg8[%c3, %c0_25, %c0_26] : memref<16x8x128xf32, #tpu.memory_space<vmem>>, vector<1x8x128xf32>
    %72 = vector.shape_cast %71 : vector<1x8x128xf32> to vector<8x128xf32>
    %cst_27 = arith.constant dense<0.000000e+00> : vector<8x128xf32>
    %73 = tpu.matmul %70, %11, %cst_27 {dimension_numbers = #tpu.dot_dimension_numbers<[1], [0], [0], [1], [0, 0, 1, 1], [], []>} : vector<8x32xf32>, vector<32x128xf32>, vector<8x128xf32> -> vector<8x128xf32>
    %74 = arith.addf %72, %73 : vector<8x128xf32>
    %75 = arith.negf %74 : vector<8x128xf32>
    %76 = math.exp %75 : vector<8x128xf32>
    %cst_28 = arith.constant 1.000000e+00 : f32
    %77 = vector.broadcast %cst_28 : f32 to vector<8x128xf32>
    %78 = arith.addf %77, %76 : vector<8x128xf32>
    %79 = arith.divf %77, %78 : vector<8x128xf32>
    %80 = math.tanh %74 : vector<8x128xf32>
    %81 = vector.extract_strided_slice %79 {offsets = [0, 0], sizes = [8, 32], strides = [1, 1]} : vector<8x128xf32> to vector<8x32xf32>
    %82 = vector.extract_strided_slice %79 {offsets = [0, 32], sizes = [8, 32], strides = [1, 1]} : vector<8x128xf32> to vector<8x32xf32>
    %83 = vector.extract_strided_slice %80 {offsets = [0, 64], sizes = [8, 32], strides = [1, 1]} : vector<8x128xf32> to vector<8x32xf32>
    %84 = vector.extract_strided_slice %79 {offsets = [0, 96], sizes = [8, 32], strides = [1, 1]} : vector<8x128xf32> to vector<8x32xf32>
    %85 = arith.mulf %82, %68 : vector<8x32xf32>
    %86 = arith.mulf %81, %83 : vector<8x32xf32>
    %87 = arith.addf %85, %86 : vector<8x32xf32>
    %88 = math.tanh %87 : vector<8x32xf32>
    %89 = arith.mulf %84, %88 : vector<8x32xf32>
    %c4 = arith.constant 4 : index
    %c0_29 = arith.constant 0 : index
    %c0_30 = arith.constant 0 : index
    %90 = vector.load %arg8[%c4, %c0_29, %c0_30] : memref<16x8x128xf32, #tpu.memory_space<vmem>>, vector<1x8x128xf32>
    %91 = vector.shape_cast %90 : vector<1x8x128xf32> to vector<8x128xf32>
    %cst_31 = arith.constant dense<0.000000e+00> : vector<8x128xf32>
    %92 = tpu.matmul %89, %11, %cst_31 {dimension_numbers = #tpu.dot_dimension_numbers<[1], [0], [0], [1], [0, 0, 1, 1], [], []>} : vector<8x32xf32>, vector<32x128xf32>, vector<8x128xf32> -> vector<8x128xf32>
    %93 = arith.addf %91, %92 : vector<8x128xf32>
    %94 = arith.negf %93 : vector<8x128xf32>
    %95 = math.exp %94 : vector<8x128xf32>
    %cst_32 = arith.constant 1.000000e+00 : f32
    %96 = vector.broadcast %cst_32 : f32 to vector<8x128xf32>
    %97 = arith.addf %96, %95 : vector<8x128xf32>
    %98 = arith.divf %96, %97 : vector<8x128xf32>
    %99 = math.tanh %93 : vector<8x128xf32>
    %100 = vector.extract_strided_slice %98 {offsets = [0, 0], sizes = [8, 32], strides = [1, 1]} : vector<8x128xf32> to vector<8x32xf32>
    %101 = vector.extract_strided_slice %98 {offsets = [0, 32], sizes = [8, 32], strides = [1, 1]} : vector<8x128xf32> to vector<8x32xf32>
    %102 = vector.extract_strided_slice %99 {offsets = [0, 64], sizes = [8, 32], strides = [1, 1]} : vector<8x128xf32> to vector<8x32xf32>
    %103 = vector.extract_strided_slice %98 {offsets = [0, 96], sizes = [8, 32], strides = [1, 1]} : vector<8x128xf32> to vector<8x32xf32>
    %104 = arith.mulf %101, %87 : vector<8x32xf32>
    %105 = arith.mulf %100, %102 : vector<8x32xf32>
    %106 = arith.addf %104, %105 : vector<8x32xf32>
    %107 = math.tanh %106 : vector<8x32xf32>
    %108 = arith.mulf %103, %107 : vector<8x32xf32>
    %c5 = arith.constant 5 : index
    %c0_33 = arith.constant 0 : index
    %c0_34 = arith.constant 0 : index
    %109 = vector.load %arg8[%c5, %c0_33, %c0_34] : memref<16x8x128xf32, #tpu.memory_space<vmem>>, vector<1x8x128xf32>
    %110 = vector.shape_cast %109 : vector<1x8x128xf32> to vector<8x128xf32>
    %cst_35 = arith.constant dense<0.000000e+00> : vector<8x128xf32>
    %111 = tpu.matmul %108, %11, %cst_35 {dimension_numbers = #tpu.dot_dimension_numbers<[1], [0], [0], [1], [0, 0, 1, 1], [], []>} : vector<8x32xf32>, vector<32x128xf32>, vector<8x128xf32> -> vector<8x128xf32>
    %112 = arith.addf %110, %111 : vector<8x128xf32>
    %113 = arith.negf %112 : vector<8x128xf32>
    %114 = math.exp %113 : vector<8x128xf32>
    %cst_36 = arith.constant 1.000000e+00 : f32
    %115 = vector.broadcast %cst_36 : f32 to vector<8x128xf32>
    %116 = arith.addf %115, %114 : vector<8x128xf32>
    %117 = arith.divf %115, %116 : vector<8x128xf32>
    %118 = math.tanh %112 : vector<8x128xf32>
    %119 = vector.extract_strided_slice %117 {offsets = [0, 0], sizes = [8, 32], strides = [1, 1]} : vector<8x128xf32> to vector<8x32xf32>
    %120 = vector.extract_strided_slice %117 {offsets = [0, 32], sizes = [8, 32], strides = [1, 1]} : vector<8x128xf32> to vector<8x32xf32>
    %121 = vector.extract_strided_slice %118 {offsets = [0, 64], sizes = [8, 32], strides = [1, 1]} : vector<8x128xf32> to vector<8x32xf32>
    %122 = vector.extract_strided_slice %117 {offsets = [0, 96], sizes = [8, 32], strides = [1, 1]} : vector<8x128xf32> to vector<8x32xf32>
    %123 = arith.mulf %120, %106 : vector<8x32xf32>
    %124 = arith.mulf %119, %121 : vector<8x32xf32>
    %125 = arith.addf %123, %124 : vector<8x32xf32>
    %126 = math.tanh %125 : vector<8x32xf32>
    %127 = arith.mulf %122, %126 : vector<8x32xf32>
    %c6 = arith.constant 6 : index
    %c0_37 = arith.constant 0 : index
    %c0_38 = arith.constant 0 : index
    %128 = vector.load %arg8[%c6, %c0_37, %c0_38] : memref<16x8x128xf32, #tpu.memory_space<vmem>>, vector<1x8x128xf32>
    %129 = vector.shape_cast %128 : vector<1x8x128xf32> to vector<8x128xf32>
    %cst_39 = arith.constant dense<0.000000e+00> : vector<8x128xf32>
    %130 = tpu.matmul %127, %11, %cst_39 {dimension_numbers = #tpu.dot_dimension_numbers<[1], [0], [0], [1], [0, 0, 1, 1], [], []>} : vector<8x32xf32>, vector<32x128xf32>, vector<8x128xf32> -> vector<8x128xf32>
    %131 = arith.addf %129, %130 : vector<8x128xf32>
    %132 = arith.negf %131 : vector<8x128xf32>
    %133 = math.exp %132 : vector<8x128xf32>
    %cst_40 = arith.constant 1.000000e+00 : f32
    %134 = vector.broadcast %cst_40 : f32 to vector<8x128xf32>
    %135 = arith.addf %134, %133 : vector<8x128xf32>
    %136 = arith.divf %134, %135 : vector<8x128xf32>
    %137 = math.tanh %131 : vector<8x128xf32>
    %138 = vector.extract_strided_slice %136 {offsets = [0, 0], sizes = [8, 32], strides = [1, 1]} : vector<8x128xf32> to vector<8x32xf32>
    %139 = vector.extract_strided_slice %136 {offsets = [0, 32], sizes = [8, 32], strides = [1, 1]} : vector<8x128xf32> to vector<8x32xf32>
    %140 = vector.extract_strided_slice %137 {offsets = [0, 64], sizes = [8, 32], strides = [1, 1]} : vector<8x128xf32> to vector<8x32xf32>
    %141 = vector.extract_strided_slice %136 {offsets = [0, 96], sizes = [8, 32], strides = [1, 1]} : vector<8x128xf32> to vector<8x32xf32>
    %142 = arith.mulf %139, %125 : vector<8x32xf32>
    %143 = arith.mulf %138, %140 : vector<8x32xf32>
    %144 = arith.addf %142, %143 : vector<8x32xf32>
    %145 = math.tanh %144 : vector<8x32xf32>
    %146 = arith.mulf %141, %145 : vector<8x32xf32>
    %c7 = arith.constant 7 : index
    %c0_41 = arith.constant 0 : index
    %c0_42 = arith.constant 0 : index
    %147 = vector.load %arg8[%c7, %c0_41, %c0_42] : memref<16x8x128xf32, #tpu.memory_space<vmem>>, vector<1x8x128xf32>
    %148 = vector.shape_cast %147 : vector<1x8x128xf32> to vector<8x128xf32>
    %cst_43 = arith.constant dense<0.000000e+00> : vector<8x128xf32>
    %149 = tpu.matmul %146, %11, %cst_43 {dimension_numbers = #tpu.dot_dimension_numbers<[1], [0], [0], [1], [0, 0, 1, 1], [], []>} : vector<8x32xf32>, vector<32x128xf32>, vector<8x128xf32> -> vector<8x128xf32>
    %150 = arith.addf %148, %149 : vector<8x128xf32>
    %151 = arith.negf %150 : vector<8x128xf32>
    %152 = math.exp %151 : vector<8x128xf32>
    %cst_44 = arith.constant 1.000000e+00 : f32
    %153 = vector.broadcast %cst_44 : f32 to vector<8x128xf32>
    %154 = arith.addf %153, %152 : vector<8x128xf32>
    %155 = arith.divf %153, %154 : vector<8x128xf32>
    %156 = math.tanh %150 : vector<8x128xf32>
    %157 = vector.extract_strided_slice %155 {offsets = [0, 0], sizes = [8, 32], strides = [1, 1]} : vector<8x128xf32> to vector<8x32xf32>
    %158 = vector.extract_strided_slice %155 {offsets = [0, 32], sizes = [8, 32], strides = [1, 1]} : vector<8x128xf32> to vector<8x32xf32>
    %159 = vector.extract_strided_slice %156 {offsets = [0, 64], sizes = [8, 32], strides = [1, 1]} : vector<8x128xf32> to vector<8x32xf32>
    %160 = vector.extract_strided_slice %155 {offsets = [0, 96], sizes = [8, 32], strides = [1, 1]} : vector<8x128xf32> to vector<8x32xf32>
    %161 = arith.mulf %158, %144 : vector<8x32xf32>
    %162 = arith.mulf %157, %159 : vector<8x32xf32>
    %163 = arith.addf %161, %162 : vector<8x32xf32>
    %164 = math.tanh %163 : vector<8x32xf32>
    %165 = arith.mulf %160, %164 : vector<8x32xf32>
    %c8 = arith.constant 8 : index
    %c0_45 = arith.constant 0 : index
    %c0_46 = arith.constant 0 : index
    %166 = vector.load %arg8[%c8, %c0_45, %c0_46] : memref<16x8x128xf32, #tpu.memory_space<vmem>>, vector<1x8x128xf32>
    %167 = vector.shape_cast %166 : vector<1x8x128xf32> to vector<8x128xf32>
    %cst_47 = arith.constant dense<0.000000e+00> : vector<8x128xf32>
    %168 = tpu.matmul %165, %11, %cst_47 {dimension_numbers = #tpu.dot_dimension_numbers<[1], [0], [0], [1], [0, 0, 1, 1], [], []>} : vector<8x32xf32>, vector<32x128xf32>, vector<8x128xf32> -> vector<8x128xf32>
    %169 = arith.addf %167, %168 : vector<8x128xf32>
    %170 = arith.negf %169 : vector<8x128xf32>
    %171 = math.exp %170 : vector<8x128xf32>
    %cst_48 = arith.constant 1.000000e+00 : f32
    %172 = vector.broadcast %cst_48 : f32 to vector<8x128xf32>
    %173 = arith.addf %172, %171 : vector<8x128xf32>
    %174 = arith.divf %172, %173 : vector<8x128xf32>
    %175 = math.tanh %169 : vector<8x128xf32>
    %176 = vector.extract_strided_slice %174 {offsets = [0, 0], sizes = [8, 32], strides = [1, 1]} : vector<8x128xf32> to vector<8x32xf32>
    %177 = vector.extract_strided_slice %174 {offsets = [0, 32], sizes = [8, 32], strides = [1, 1]} : vector<8x128xf32> to vector<8x32xf32>
    %178 = vector.extract_strided_slice %175 {offsets = [0, 64], sizes = [8, 32], strides = [1, 1]} : vector<8x128xf32> to vector<8x32xf32>
    %179 = vector.extract_strided_slice %174 {offsets = [0, 96], sizes = [8, 32], strides = [1, 1]} : vector<8x128xf32> to vector<8x32xf32>
    %180 = arith.mulf %177, %163 : vector<8x32xf32>
    %181 = arith.mulf %176, %178 : vector<8x32xf32>
    %182 = arith.addf %180, %181 : vector<8x32xf32>
    %183 = math.tanh %182 : vector<8x32xf32>
    %184 = arith.mulf %179, %183 : vector<8x32xf32>
    %c9 = arith.constant 9 : index
    %c0_49 = arith.constant 0 : index
    %c0_50 = arith.constant 0 : index
    %185 = vector.load %arg8[%c9, %c0_49, %c0_50] : memref<16x8x128xf32, #tpu.memory_space<vmem>>, vector<1x8x128xf32>
    %186 = vector.shape_cast %185 : vector<1x8x128xf32> to vector<8x128xf32>
    %cst_51 = arith.constant dense<0.000000e+00> : vector<8x128xf32>
    %187 = tpu.matmul %184, %11, %cst_51 {dimension_numbers = #tpu.dot_dimension_numbers<[1], [0], [0], [1], [0, 0, 1, 1], [], []>} : vector<8x32xf32>, vector<32x128xf32>, vector<8x128xf32> -> vector<8x128xf32>
    %188 = arith.addf %186, %187 : vector<8x128xf32>
    %189 = arith.negf %188 : vector<8x128xf32>
    %190 = math.exp %189 : vector<8x128xf32>
    %cst_52 = arith.constant 1.000000e+00 : f32
    %191 = vector.broadcast %cst_52 : f32 to vector<8x128xf32>
    %192 = arith.addf %191, %190 : vector<8x128xf32>
    %193 = arith.divf %191, %192 : vector<8x128xf32>
    %194 = math.tanh %188 : vector<8x128xf32>
    %195 = vector.extract_strided_slice %193 {offsets = [0, 0], sizes = [8, 32], strides = [1, 1]} : vector<8x128xf32> to vector<8x32xf32>
    %196 = vector.extract_strided_slice %193 {offsets = [0, 32], sizes = [8, 32], strides = [1, 1]} : vector<8x128xf32> to vector<8x32xf32>
    %197 = vector.extract_strided_slice %194 {offsets = [0, 64], sizes = [8, 32], strides = [1, 1]} : vector<8x128xf32> to vector<8x32xf32>
    %198 = vector.extract_strided_slice %193 {offsets = [0, 96], sizes = [8, 32], strides = [1, 1]} : vector<8x128xf32> to vector<8x32xf32>
    %199 = arith.mulf %196, %182 : vector<8x32xf32>
    %200 = arith.mulf %195, %197 : vector<8x32xf32>
    %201 = arith.addf %199, %200 : vector<8x32xf32>
    %202 = math.tanh %201 : vector<8x32xf32>
    %203 = arith.mulf %198, %202 : vector<8x32xf32>
    %c10 = arith.constant 10 : index
    %c0_53 = arith.constant 0 : index
    %c0_54 = arith.constant 0 : index
    %204 = vector.load %arg8[%c10, %c0_53, %c0_54] : memref<16x8x128xf32, #tpu.memory_space<vmem>>, vector<1x8x128xf32>
    %205 = vector.shape_cast %204 : vector<1x8x128xf32> to vector<8x128xf32>
    %cst_55 = arith.constant dense<0.000000e+00> : vector<8x128xf32>
    %206 = tpu.matmul %203, %11, %cst_55 {dimension_numbers = #tpu.dot_dimension_numbers<[1], [0], [0], [1], [0, 0, 1, 1], [], []>} : vector<8x32xf32>, vector<32x128xf32>, vector<8x128xf32> -> vector<8x128xf32>
    %207 = arith.addf %205, %206 : vector<8x128xf32>
    %208 = arith.negf %207 : vector<8x128xf32>
    %209 = math.exp %208 : vector<8x128xf32>
    %cst_56 = arith.constant 1.000000e+00 : f32
    %210 = vector.broadcast %cst_56 : f32 to vector<8x128xf32>
    %211 = arith.addf %210, %209 : vector<8x128xf32>
    %212 = arith.divf %210, %211 : vector<8x128xf32>
    %213 = math.tanh %207 : vector<8x128xf32>
    %214 = vector.extract_strided_slice %212 {offsets = [0, 0], sizes = [8, 32], strides = [1, 1]} : vector<8x128xf32> to vector<8x32xf32>
    %215 = vector.extract_strided_slice %212 {offsets = [0, 32], sizes = [8, 32], strides = [1, 1]} : vector<8x128xf32> to vector<8x32xf32>
    %216 = vector.extract_strided_slice %213 {offsets = [0, 64], sizes = [8, 32], strides = [1, 1]} : vector<8x128xf32> to vector<8x32xf32>
    %217 = vector.extract_strided_slice %212 {offsets = [0, 96], sizes = [8, 32], strides = [1, 1]} : vector<8x128xf32> to vector<8x32xf32>
    %218 = arith.mulf %215, %201 : vector<8x32xf32>
    %219 = arith.mulf %214, %216 : vector<8x32xf32>
    %220 = arith.addf %218, %219 : vector<8x32xf32>
    %221 = math.tanh %220 : vector<8x32xf32>
    %222 = arith.mulf %217, %221 : vector<8x32xf32>
    %c11 = arith.constant 11 : index
    %c0_57 = arith.constant 0 : index
    %c0_58 = arith.constant 0 : index
    %223 = vector.load %arg8[%c11, %c0_57, %c0_58] : memref<16x8x128xf32, #tpu.memory_space<vmem>>, vector<1x8x128xf32>
    %224 = vector.shape_cast %223 : vector<1x8x128xf32> to vector<8x128xf32>
    %cst_59 = arith.constant dense<0.000000e+00> : vector<8x128xf32>
    %225 = tpu.matmul %222, %11, %cst_59 {dimension_numbers = #tpu.dot_dimension_numbers<[1], [0], [0], [1], [0, 0, 1, 1], [], []>} : vector<8x32xf32>, vector<32x128xf32>, vector<8x128xf32> -> vector<8x128xf32>
    %226 = arith.addf %224, %225 : vector<8x128xf32>
    %227 = arith.negf %226 : vector<8x128xf32>
    %228 = math.exp %227 : vector<8x128xf32>
    %cst_60 = arith.constant 1.000000e+00 : f32
    %229 = vector.broadcast %cst_60 : f32 to vector<8x128xf32>
    %230 = arith.addf %229, %228 : vector<8x128xf32>
    %231 = arith.divf %229, %230 : vector<8x128xf32>
    %232 = math.tanh %226 : vector<8x128xf32>
    %233 = vector.extract_strided_slice %231 {offsets = [0, 0], sizes = [8, 32], strides = [1, 1]} : vector<8x128xf32> to vector<8x32xf32>
    %234 = vector.extract_strided_slice %231 {offsets = [0, 32], sizes = [8, 32], strides = [1, 1]} : vector<8x128xf32> to vector<8x32xf32>
    %235 = vector.extract_strided_slice %232 {offsets = [0, 64], sizes = [8, 32], strides = [1, 1]} : vector<8x128xf32> to vector<8x32xf32>
    %236 = vector.extract_strided_slice %231 {offsets = [0, 96], sizes = [8, 32], strides = [1, 1]} : vector<8x128xf32> to vector<8x32xf32>
    %237 = arith.mulf %234, %220 : vector<8x32xf32>
    %238 = arith.mulf %233, %235 : vector<8x32xf32>
    %239 = arith.addf %237, %238 : vector<8x32xf32>
    %240 = math.tanh %239 : vector<8x32xf32>
    %241 = arith.mulf %236, %240 : vector<8x32xf32>
    %c12 = arith.constant 12 : index
    %c0_61 = arith.constant 0 : index
    %c0_62 = arith.constant 0 : index
    %242 = vector.load %arg8[%c12, %c0_61, %c0_62] : memref<16x8x128xf32, #tpu.memory_space<vmem>>, vector<1x8x128xf32>
    %243 = vector.shape_cast %242 : vector<1x8x128xf32> to vector<8x128xf32>
    %cst_63 = arith.constant dense<0.000000e+00> : vector<8x128xf32>
    %244 = tpu.matmul %241, %11, %cst_63 {dimension_numbers = #tpu.dot_dimension_numbers<[1], [0], [0], [1], [0, 0, 1, 1], [], []>} : vector<8x32xf32>, vector<32x128xf32>, vector<8x128xf32> -> vector<8x128xf32>
    %245 = arith.addf %243, %244 : vector<8x128xf32>
    %246 = arith.negf %245 : vector<8x128xf32>
    %247 = math.exp %246 : vector<8x128xf32>
    %cst_64 = arith.constant 1.000000e+00 : f32
    %248 = vector.broadcast %cst_64 : f32 to vector<8x128xf32>
    %249 = arith.addf %248, %247 : vector<8x128xf32>
    %250 = arith.divf %248, %249 : vector<8x128xf32>
    %251 = math.tanh %245 : vector<8x128xf32>
    %252 = vector.extract_strided_slice %250 {offsets = [0, 0], sizes = [8, 32], strides = [1, 1]} : vector<8x128xf32> to vector<8x32xf32>
    %253 = vector.extract_strided_slice %250 {offsets = [0, 32], sizes = [8, 32], strides = [1, 1]} : vector<8x128xf32> to vector<8x32xf32>
    %254 = vector.extract_strided_slice %251 {offsets = [0, 64], sizes = [8, 32], strides = [1, 1]} : vector<8x128xf32> to vector<8x32xf32>
    %255 = vector.extract_strided_slice %250 {offsets = [0, 96], sizes = [8, 32], strides = [1, 1]} : vector<8x128xf32> to vector<8x32xf32>
    %256 = arith.mulf %253, %239 : vector<8x32xf32>
    %257 = arith.mulf %252, %254 : vector<8x32xf32>
    %258 = arith.addf %256, %257 : vector<8x32xf32>
    %259 = math.tanh %258 : vector<8x32xf32>
    %260 = arith.mulf %255, %259 : vector<8x32xf32>
    %c13 = arith.constant 13 : index
    %c0_65 = arith.constant 0 : index
    %c0_66 = arith.constant 0 : index
    %261 = vector.load %arg8[%c13, %c0_65, %c0_66] : memref<16x8x128xf32, #tpu.memory_space<vmem>>, vector<1x8x128xf32>
    %262 = vector.shape_cast %261 : vector<1x8x128xf32> to vector<8x128xf32>
    %cst_67 = arith.constant dense<0.000000e+00> : vector<8x128xf32>
    %263 = tpu.matmul %260, %11, %cst_67 {dimension_numbers = #tpu.dot_dimension_numbers<[1], [0], [0], [1], [0, 0, 1, 1], [], []>} : vector<8x32xf32>, vector<32x128xf32>, vector<8x128xf32> -> vector<8x128xf32>
    %264 = arith.addf %262, %263 : vector<8x128xf32>
    %265 = arith.negf %264 : vector<8x128xf32>
    %266 = math.exp %265 : vector<8x128xf32>
    %cst_68 = arith.constant 1.000000e+00 : f32
    %267 = vector.broadcast %cst_68 : f32 to vector<8x128xf32>
    %268 = arith.addf %267, %266 : vector<8x128xf32>
    %269 = arith.divf %267, %268 : vector<8x128xf32>
    %270 = math.tanh %264 : vector<8x128xf32>
    %271 = vector.extract_strided_slice %269 {offsets = [0, 0], sizes = [8, 32], strides = [1, 1]} : vector<8x128xf32> to vector<8x32xf32>
    %272 = vector.extract_strided_slice %269 {offsets = [0, 32], sizes = [8, 32], strides = [1, 1]} : vector<8x128xf32> to vector<8x32xf32>
    %273 = vector.extract_strided_slice %270 {offsets = [0, 64], sizes = [8, 32], strides = [1, 1]} : vector<8x128xf32> to vector<8x32xf32>
    %274 = vector.extract_strided_slice %269 {offsets = [0, 96], sizes = [8, 32], strides = [1, 1]} : vector<8x128xf32> to vector<8x32xf32>
    %275 = arith.mulf %272, %258 : vector<8x32xf32>
    %276 = arith.mulf %271, %273 : vector<8x32xf32>
    %277 = arith.addf %275, %276 : vector<8x32xf32>
    %278 = math.tanh %277 : vector<8x32xf32>
    %279 = arith.mulf %274, %278 : vector<8x32xf32>
    %c14 = arith.constant 14 : index
    %c0_69 = arith.constant 0 : index
    %c0_70 = arith.constant 0 : index
    %280 = vector.load %arg8[%c14, %c0_69, %c0_70] : memref<16x8x128xf32, #tpu.memory_space<vmem>>, vector<1x8x128xf32>
    %281 = vector.shape_cast %280 : vector<1x8x128xf32> to vector<8x128xf32>
    %cst_71 = arith.constant dense<0.000000e+00> : vector<8x128xf32>
    %282 = tpu.matmul %279, %11, %cst_71 {dimension_numbers = #tpu.dot_dimension_numbers<[1], [0], [0], [1], [0, 0, 1, 1], [], []>} : vector<8x32xf32>, vector<32x128xf32>, vector<8x128xf32> -> vector<8x128xf32>
    %283 = arith.addf %281, %282 : vector<8x128xf32>
    %284 = arith.negf %283 : vector<8x128xf32>
    %285 = math.exp %284 : vector<8x128xf32>
    %cst_72 = arith.constant 1.000000e+00 : f32
    %286 = vector.broadcast %cst_72 : f32 to vector<8x128xf32>
    %287 = arith.addf %286, %285 : vector<8x128xf32>
    %288 = arith.divf %286, %287 : vector<8x128xf32>
    %289 = math.tanh %283 : vector<8x128xf32>
    %290 = vector.extract_strided_slice %288 {offsets = [0, 0], sizes = [8, 32], strides = [1, 1]} : vector<8x128xf32> to vector<8x32xf32>
    %291 = vector.extract_strided_slice %288 {offsets = [0, 32], sizes = [8, 32], strides = [1, 1]} : vector<8x128xf32> to vector<8x32xf32>
    %292 = vector.extract_strided_slice %289 {offsets = [0, 64], sizes = [8, 32], strides = [1, 1]} : vector<8x128xf32> to vector<8x32xf32>
    %293 = vector.extract_strided_slice %288 {offsets = [0, 96], sizes = [8, 32], strides = [1, 1]} : vector<8x128xf32> to vector<8x32xf32>
    %294 = arith.mulf %291, %277 : vector<8x32xf32>
    %295 = arith.mulf %290, %292 : vector<8x32xf32>
    %296 = arith.addf %294, %295 : vector<8x32xf32>
    %297 = math.tanh %296 : vector<8x32xf32>
    %298 = arith.mulf %293, %297 : vector<8x32xf32>
    %c15 = arith.constant 15 : index
    %c0_73 = arith.constant 0 : index
    %c0_74 = arith.constant 0 : index
    %299 = vector.load %arg8[%c15, %c0_73, %c0_74] : memref<16x8x128xf32, #tpu.memory_space<vmem>>, vector<1x8x128xf32>
    %300 = vector.shape_cast %299 : vector<1x8x128xf32> to vector<8x128xf32>
    %cst_75 = arith.constant dense<0.000000e+00> : vector<8x128xf32>
    %301 = tpu.matmul %298, %11, %cst_75 {dimension_numbers = #tpu.dot_dimension_numbers<[1], [0], [0], [1], [0, 0, 1, 1], [], []>} : vector<8x32xf32>, vector<32x128xf32>, vector<8x128xf32> -> vector<8x128xf32>
    %302 = arith.addf %300, %301 : vector<8x128xf32>
    %303 = arith.negf %302 : vector<8x128xf32>
    %304 = math.exp %303 : vector<8x128xf32>
    %cst_76 = arith.constant 1.000000e+00 : f32
    %305 = vector.broadcast %cst_76 : f32 to vector<8x128xf32>
    %306 = arith.addf %305, %304 : vector<8x128xf32>
    %307 = arith.divf %305, %306 : vector<8x128xf32>
    %308 = math.tanh %302 : vector<8x128xf32>
    %309 = vector.extract_strided_slice %307 {offsets = [0, 0], sizes = [8, 32], strides = [1, 1]} : vector<8x128xf32> to vector<8x32xf32>
    %310 = vector.extract_strided_slice %307 {offsets = [0, 32], sizes = [8, 32], strides = [1, 1]} : vector<8x128xf32> to vector<8x32xf32>
    %311 = vector.extract_strided_slice %308 {offsets = [0, 64], sizes = [8, 32], strides = [1, 1]} : vector<8x128xf32> to vector<8x32xf32>
    %312 = vector.extract_strided_slice %307 {offsets = [0, 96], sizes = [8, 32], strides = [1, 1]} : vector<8x128xf32> to vector<8x32xf32>
    %313 = arith.mulf %310, %296 : vector<8x32xf32>
    %314 = arith.mulf %309, %311 : vector<8x32xf32>
    %315 = arith.addf %313, %314 : vector<8x32xf32>
    %316 = math.tanh %315 : vector<8x32xf32>
    %317 = arith.mulf %312, %316 : vector<8x32xf32>
    %c0_77 = arith.constant 0 : index
    %c0_78 = arith.constant 0 : index
    %318 = vector.load %arg5[%c0_77, %c0_78] : memref<1x32xf32, #tpu.memory_space<vmem>>, vector<1x32xf32>
    %cst_79 = arith.constant dense<0.000000e+00> : vector<1x8xf32>
    %319 = tpu.matmul %318, %317, %cst_79 {dimension_numbers = #tpu.dot_dimension_numbers<[1], [1], [0], [0], [0, 0, 1, 0], [], []>} : vector<1x32xf32>, vector<8x32xf32>, vector<1x8xf32> -> vector<1x8xf32>
    %c0_80 = arith.constant 0 : index
    %c0_81 = arith.constant 0 : index
    %320 = vector.load %arg6[%c0_80, %c0_81] : memref<1x1xf32, #tpu.memory_space<vmem>>, vector<1x1xf32>
    %321 = vector.broadcast %320 : vector<1x1xf32> to vector<1x8xf32>
    %322 = arith.addf %319, %321 : vector<1x8xf32>
    %c0_82 = arith.constant 0 : index
    %c0_83 = arith.constant 0 : index
    %323 = vector.load %arg7[%c0_82, %c0_83] : memref<1x8xf32, #tpu.memory_space<vmem>>, vector<1x8xf32>
    tpu.vector_store %arg7[%c0_82, %c0_83], %322 {strides = array<i32>} : memref<1x8xf32, #tpu.memory_space<vmem>>, vector<1x8xf32>,
    return
  }
  func.func @transform_0(%arg0: i32) -> (i32, i32, i32) {
    %c0_i32 = arith.constant 0 : i32
    %c0_i32_0 = arith.constant 0 : i32
    %c0_i32_1 = arith.constant 0 : i32
    return %c0_i32, %arg0, %c0_i32_0 : i32, i32, i32
  }
  func.func @transform_1(%arg0: i32) -> (i32, i32) {
    %c0_i32 = arith.constant 0 : i32
    %c0_i32_0 = arith.constant 0 : i32
    %c0_i32_1 = arith.constant 0 : i32
    return %c0_i32, %c0_i32_0 : i32, i32
  }
  func.func @transform_2(%arg0: i32) -> (i32, i32) {
    %c0_i32 = arith.constant 0 : i32
    %c0_i32_0 = arith.constant 0 : i32
    %c0_i32_1 = arith.constant 0 : i32
    return %c0_i32, %c0_i32_0 : i32, i32
  }
  func.func @transform_3(%arg0: i32) -> (i32, i32) {
    %c0_i32 = arith.constant 0 : i32
    %c0_i32_0 = arith.constant 0 : i32
    %c0_i32_1 = arith.constant 0 : i32
    return %c0_i32, %c0_i32_0 : i32, i32
  }
  func.func @transform_4(%arg0: i32) -> (i32, i32) {
    %c0_i32 = arith.constant 0 : i32
    %c0_i32_0 = arith.constant 0 : i32
    %c0_i32_1 = arith.constant 0 : i32
    return %c0_i32, %c0_i32_0 : i32, i32
  }
  func.func @transform_5(%arg0: i32) -> (i32, i32) {
    %c0_i32 = arith.constant 0 : i32
    %c0_i32_0 = arith.constant 0 : i32
    %c0_i32_1 = arith.constant 0 : i32
    return %c0_i32, %c0_i32_0 : i32, i32
  }
  func.func @transform_6(%arg0: i32) -> (i32, i32) {
    %c0_i32 = arith.constant 0 : i32
    %c0_i32_0 = arith.constant 0 : i32
    return %c0_i32, %arg0 : i32, i32
  }
}

</mosaic_0001>

<llo_original>
// kernel: tpu_custom_call.1
$region0: #{tpu_custom_call.1}
  #allocation0 [shape = 'u32[]', space=smem, size = 0x4, offset = 0x4, fixed_abs, tag = 'smem constant byte address 0x4 - core index']
  #allocation1 [shape = 'u32[144,128]{1,0:T(1,128)}', space=vmem, size = 0x12000, scoped, tag = 'internal scratch']
  #allocation2 [shape = 'f32[16,8,128]{2,1,0:T(8,128)}', space=vmem, size = 0x10000, scoped, tag = 'scratch operand']
  #allocation3 [shape = 'f32[1,1]{1,0:T(1,128)S(1)}', space=vmem, size = 0x200, scoped, tag = 'scoped memory for tpu_custom_call.1']
  %s0 = inlined_call_operand.vmem [shape: f32[16,8,1], index: 0, kind: input, shape index: {}]
  %s1 = inlined_call_operand.vmem [shape: f32[1,128], index: 1, kind: input, shape index: {}]
  %s2 = inlined_call_operand.vmem [shape: f32[32,128], index: 2, kind: input, shape index: {}]
  %s3 = inlined_call_operand.vmem [shape: f32[1,128], index: 3, kind: input, shape index: {}]
  %s4 = inlined_call_operand.vmem [shape: f32[1,32], index: 4, kind: input, shape index: {}]
  %s5 = inlined_call_operand.<no memory space> [shape: f32[1,1], index: 5, kind: input, shape index: {}]
  %s6 = inlined_call_operand.hbm [shape: f32[1,8], index: 6, kind: output, shape index: {}]
  %s7 = sld [smem:[#allocation0]]
  $region34: #{tpu_custom_call.1} parent=0
    _
  %s9 = ssub.s32 1, %s7
  %s10 = scalar_select 0, %s9, %s7
  %v11 = vstv %s5
  %12 = vst [vmem:[#allocation3] sm:$0x1] %v11
  $region1: #{tpu_custom_call.1} parent=0
    #allocation4 [shape = 'u8[512]{0}', space=vmem, size = 0x400, scoped, tag = 'output window, operand 0, single buffered']
    #allocation5 [shape = 's32[1]{0}', space=sflag, size = 0x4, scoped, tag = 'scoped memory for tpu_custom_call.1']
    %13 = vsyncpa [#allocation5], 0
    // Predicated region
    $region2: #{tpu_custom_call.1} parent=1 // pred_check
      _
    $region3: #{tpu_custom_call.1} parent=1 // pred_check_branch
      %15 = sbr.rel (0) target = $region5
    $region4: #{tpu_custom_call.1} parent=1 // pred_region
      _
    $region5: #{tpu_custom_call.1} parent=1 // pred_fallthru
      _
    // Predicated region
    $region6: #{tpu_custom_call.1} parent=1 // pred_check
      _
    $region7: #{tpu_custom_call.1} parent=1 // pred_check_branch
      %17 = sbr.rel (0) target = $region9
    $region8: #{tpu_custom_call.1} parent=1 // pred_region
      _
    $region9: #{tpu_custom_call.1} parent=1 // pred_fallthru
      _
    // Predicated region
    $region10: #{tpu_custom_call.1} parent=1 // pred_check
      _
    $region11: #{tpu_custom_call.1} parent=1 // pred_check_branch
      %19 = sbr.rel (0) target = $region13
    $region12: #{tpu_custom_call.1} parent=1 // pred_region
      _
    $region13: #{tpu_custom_call.1} parent=1 // pred_fallthru
      _
    // Predicated region
    $region14: #{tpu_custom_call.1} parent=1 // pred_check
      _
    $region15: #{tpu_custom_call.1} parent=1 // pred_check_branch
      %21 = sbr.rel (0) target = $region17
    $region16: #{tpu_custom_call.1} parent=1 // pred_region
      _
    $region17: #{tpu_custom_call.1} parent=1 // pred_fallthru
      _
    // Predicated region
    $region18: #{tpu_custom_call.1} parent=1 // pred_check
      _
    $region19: #{tpu_custom_call.1} parent=1 // pred_check_branch
      %23 = sbr.rel (0) target = $region21
    $region20: #{tpu_custom_call.1} parent=1 // pred_region
      _
    $region21: #{tpu_custom_call.1} parent=1 // pred_fallthru
      _
    // Predicated region
    $region22: #{tpu_custom_call.1} parent=1 // pred_check
      _
    $region23: #{tpu_custom_call.1} parent=1 // pred_check_branch
      %25 = sbr.rel (0) target = $region25
    $region24: #{tpu_custom_call.1} parent=1 // pred_region
      _
    $region25: #{tpu_custom_call.1} parent=1 // pred_fallthru
      _
    %v26 = vld [vmem:[%s0] sm:$0xff]
    %v27 = vld [vmem:[%s0 + $0x8] sm:$0xff]
    %v28 = vld [vmem:[%s0 + $0x10] sm:$0xff]
    %v29 = vld [vmem:[%s0 + $0x18] sm:$0xff]
    %v30 = vld [vmem:[%s0 + $0x20] sm:$0xff]
    %v31 = vld [vmem:[%s0 + $0x28] sm:$0xff]
    %v32 = vld [vmem:[%s0 + $0x30] sm:$0xff]
    %v33 = vld [vmem:[%s0 + $0x38] sm:$0xff]
    %v34 = vld [vmem:[%s0 + $0x40] sm:$0xff]
    %v35 = vld [vmem:[%s0 + $0x48] sm:$0xff]
    %v36 = vld [vmem:[%s0 + $0x50] sm:$0xff]
    %v37 = vld [vmem:[%s0 + $0x58] sm:$0xff]
    %v38 = vld [vmem:[%s0 + $0x60] sm:$0xff]
    %v39 = vld [vmem:[%s0 + $0x68] sm:$0xff]
    %v40 = vld [vmem:[%s0 + $0x70] sm:$0xff]
    %v41 = vld [vmem:[%s0 + $0x78] sm:$0xff]
    %v42 = vld [vmem:[%s1] sm:$0x1]
    %44 = vset.pattern.permute.xlu0 0
    %45 = vperm.xlu0 %44, %v26
    %v46 = vpop.permute.xlu0 %45
    %49 = vset.pattern.permute.xlu0 0
    %50 = vperm.xlu0 %49, %v27
    %v51 = vpop.permute.xlu0 %50
    %54 = vset.pattern.permute.xlu0 0
    %55 = vperm.xlu0 %54, %v28
    %v56 = vpop.permute.xlu0 %55
    %59 = vset.pattern.permute.xlu0 0
    %60 = vperm.xlu0 %59, %v29
    %v61 = vpop.permute.xlu0 %60
    %64 = vset.pattern.permute.xlu0 0
    %65 = vperm.xlu0 %64, %v30
    %v66 = vpop.permute.xlu0 %65
    %69 = vset.pattern.permute.xlu0 0
    %70 = vperm.xlu0 %69, %v31
    %v71 = vpop.permute.xlu0 %70
    %74 = vset.pattern.permute.xlu0 0
    %75 = vperm.xlu0 %74, %v32
    %v76 = vpop.permute.xlu0 %75
    %79 = vset.pattern.permute.xlu0 0
    %80 = vperm.xlu0 %79, %v33
    %v81 = vpop.permute.xlu0 %80
    %84 = vset.pattern.permute.xlu0 0
    %85 = vperm.xlu0 %84, %v34
    %v86 = vpop.permute.xlu0 %85
    %89 = vset.pattern.permute.xlu0 0
    %90 = vperm.xlu0 %89, %v35
    %v91 = vpop.permute.xlu0 %90
    %94 = vset.pattern.permute.xlu0 0
    %95 = vperm.xlu0 %94, %v36
    %v96 = vpop.permute.xlu0 %95
    %99 = vset.pattern.permute.xlu0 0
    %100 = vperm.xlu0 %99, %v37
    %v101 = vpop.permute.xlu0 %100
    %104 = vset.pattern.permute.xlu0 0
    %105 = vperm.xlu0 %104, %v38
    %v106 = vpop.permute.xlu0 %105
    %109 = vset.pattern.permute.xlu0 0
    %110 = vperm.xlu0 %109, %v39
    %v111 = vpop.permute.xlu0 %110
    %114 = vset.pattern.permute.xlu0 0
    %115 = vperm.xlu0 %114, %v40
    %v116 = vpop.permute.xlu0 %115
    %119 = vset.pattern.permute.xlu0 0
    %120 = vperm.xlu0 %119, %v41
    %v121 = vpop.permute.xlu0 %120
    %v124 = vlaneseq
    %v125 = vshrl.u32 %v124, 7
    %v126 = vsub.s32 0, %v125
    %v127 = vrot.slane %v42, %v126
    %v129 = vmul.f32 %v46, %v127
    %v130 = vmul.f32 %v51, %v127
    %v131 = vmul.f32 %v56, %v127
    %v132 = vmul.f32 %v61, %v127
    %v133 = vmul.f32 %v66, %v127
    %v134 = vmul.f32 %v71, %v127
    %v135 = vmul.f32 %v76, %v127
    %v136 = vmul.f32 %v81, %v127
    %v137 = vmul.f32 %v86, %v127
    %v138 = vmul.f32 %v91, %v127
    %v139 = vmul.f32 %v96, %v127
    %v140 = vmul.f32 %v101, %v127
    %v141 = vmul.f32 %v106, %v127
    %v142 = vmul.f32 %v111, %v127
    %v143 = vmul.f32 %v116, %v127
    %v144 = vmul.f32 %v121, %v127
    %v145 = vld [vmem:[%s3] sm:$0x1]
    %v147 = vlaneseq
    %v148 = vshrl.u32 %v147, 7
    %v149 = vsub.s32 0, %v148
    %v150 = vrot.slane %v145, %v149
    %v152 = vadd.f32 %v129, %v150
    %v153 = vadd.f32 %v130, %v150
    %v154 = vadd.f32 %v131, %v150
    %v155 = vadd.f32 %v132, %v150
    %v156 = vadd.f32 %v133, %v150
    %v157 = vadd.f32 %v134, %v150
    %v158 = vadd.f32 %v135, %v150
    %v159 = vadd.f32 %v136, %v150
    %v160 = vadd.f32 %v137, %v150
    %v161 = vadd.f32 %v138, %v150
    %v162 = vadd.f32 %v139, %v150
    %v163 = vadd.f32 %v140, %v150
    %v164 = vadd.f32 %v141, %v150
    %v165 = vadd.f32 %v142, %v150
    %v166 = vadd.f32 %v143, %v150
    %v167 = vadd.f32 %v144, %v150
    %168 = vst [vmem:[#allocation2] sm:$0xff] %v152
    %169 = vst [vmem:[#allocation2 + $0x8] sm:$0xff] %v153
    %170 = vst [vmem:[#allocation2 + $0x10] sm:$0xff] %v154
    %171 = vst [vmem:[#allocation2 + $0x18] sm:$0xff] %v155
    %172 = vst [vmem:[#allocation2 + $0x20] sm:$0xff] %v156
    %173 = vst [vmem:[#allocation2 + $0x28] sm:$0xff] %v157
    %174 = vst [vmem:[#allocation2 + $0x30] sm:$0xff] %v158
    %175 = vst [vmem:[#allocation2 + $0x38] sm:$0xff] %v159
    %176 = vst [vmem:[#allocation2 + $0x40] sm:$0xff] %v160
    %177 = vst [vmem:[#allocation2 + $0x48] sm:$0xff] %v161
    %178 = vst [vmem:[#allocation2 + $0x50] sm:$0xff] %v162
    %179 = vst [vmem:[#allocation2 + $0x58] sm:$0xff] %v163
    %180 = vst [vmem:[#allocation2 + $0x60] sm:$0xff] %v164
    %181 = vst [vmem:[#allocation2 + $0x68] sm:$0xff] %v165
    %182 = vst [vmem:[#allocation2 + $0x70] sm:$0xff] %v166
    %183 = vst [vmem:[#allocation2 + $0x78] sm:$0xff] %v167
    %v184 = vld [vmem:[%s2] sm:$0xff]
    %v185 = vld [vmem:[%s2 + $0x8] sm:$0xff]
    %v186 = vld [vmem:[%s2 + $0x10] sm:$0xff]
    %v187 = vld [vmem:[%s2 + $0x18] sm:$0xff]
    %v188 = vld [vmem:[#allocation2] sm:$0xff]
    %vm189 = vcmask 261120
    %v191 = vsel %vm189, 0.0, 0
    %193 = vmatprep.subr.mxu0 0.0
    %194 = vmatpush1.msra.mxu0 %v184
    %195 = vmatprep.subr.mxu0 0.0
    %196 = vmatpush1.msra.mxu0 %v185
    %197 = vmatprep.subr.mxu0 0.0
    %198 = vmatpush1.msra.mxu0 %v186
    %199 = vmatprep.subr.mxu0 0.0
    %200 = vmatpush1.msra.mxu0 %v187
    %201 = vmatprep.subr.mxu0 0.0
    %202 = vmatpush1.msra.mxu0 0.0
    %203 = vmatprep.subr.mxu0 0.0
    %204 = vmatpush1.msra.mxu0 0.0
    %205 = vmatprep.subr.mxu0 0.0
    %206 = vmatpush1.msra.mxu0 0.0
    %207 = vmatprep.subr.mxu0 0.0
    %208 = vmatpush1.msra.mxu0 0.0
    %209 = vmatprep.subr.mxu0 0.0
    %210 = vmatpush1.msra.mxu0 0.0
    %211 = vmatprep.subr.mxu0 0.0
    %212 = vmatpush1.msra.mxu0 0.0
    %213 = vmatprep.subr.mxu0 0.0
    %214 = vmatpush1.msra.mxu0 0.0
    %215 = vmatprep.subr.mxu0 0.0
    %216 = vmatpush1.msra.mxu0 0.0
    %217 = vmatprep.subr.mxu0 0.0
    %218 = vmatpush1.msra.mxu0 0.0
    %219 = vmatprep.subr.mxu0 0.0
    %220 = vmatpush1.msra.mxu0 0.0
    %221 = vmatprep.subr.mxu0 0.0
    %222 = vmatpush1.msra.mxu0 0.0
    %223 = vmatprep.subr.mxu0 0.0
    %224 = vmatpush1.msra.mxu0 0.0
    %225 = vmatprep.subr.mxu0 0.0
    %226 = vmatpush1.msra.mxu0 0.0
    %227 = vmatprep.subr.mxu0 0.0
    %228 = vmatpush1.msra.mxu0 0.0
    %229 = vmatprep.subr.mxu0 0.0
    %230 = vmatpush1.msra.mxu0 0.0
    %231 = vmatprep.subr.mxu0 0.0
    %232 = vmatpush1.msra.mxu0 0.0
    %233 = vmatprep.subr.mxu0 0.0
    %234 = vmatpush1.msra.mxu0 0.0
    %235 = vmatprep.subr.mxu0 0.0
    %236 = vmatpush1.msra.mxu0 0.0
    %237 = vmatprep.subr.mxu0 0.0
    %238 = vmatpush1.msra.mxu0 0.0
    %239 = vmatprep.subr.mxu0 0.0
    %240 = vmatpush1.msra.mxu0 0.0
    %241 = vmatprep.subr.mxu0 0.0
    %242 = vmatpush1.msra.mxu0 0.0
    %243 = vmatprep.subr.mxu0 0.0
    %244 = vmatpush1.msra.mxu0 0.0
    %245 = vmatprep.subr.mxu0 0.0
    %246 = vmatpush1.msra.mxu0 0.0
    %247 = vmatprep.subr.mxu0 0.0
    %248 = vmatpush1.msra.mxu0 0.0
    %249 = vmatprep.subr.mxu0 0.0
    %250 = vmatpush1.msra.mxu0 0.0
    %251 = vmatprep.subr.mxu0 0.0
    %252 = vmatpush1.msra.mxu0 0.0
    %253 = vmatprep.subr.mxu0 0.0
    %254 = vmatpush1.msra.mxu0 0.0
    %255 = vmatprep.subr.mxu0 0.0
    %256 = vmatpush1.msra.mxu0 0.0
    %257 = vmatprep.mubr.f32.mxu0 0.0
    %258 = vmatmul.mubr.f32.gmra.mrb[0].mxu0 %v191
    %v259 = vpop.f32.mrb[0].mxu0
    %v260 = vadd.f32 0.0, %v259
    %v261 = vpop.f32.mrb[0].mxu0
    %262 = vdwg.mxu0
    %v263 = vadd.f32 %v188, %v260
    %v264 = vxor.u32 %v263, 2147483648
    %v265 = vmul.f32 %v264, 1.442695
    %v266 = vpow.pop %v265
    %v267 = vadd.f32 %v266, 1.0
    %v268 = vrcp.pop %v267
    %v269 = vmul.f32 1.0, %v268
    %v270 = vtanh.pop %v263
    %v271 = vmul.f32 %v269, 0.0
    %273 = vrot.lane.b32.xlu0 %v270, 64
    %v274 = vpop.permute.xlu0 %273
    %v276 = vmul.f32 %v269, %v274
    %278 = vrot.lane.b32.xlu0 %v276, 32
    %v279 = vpop.permute.xlu0 %278
    %v281 = vadd.f32 %v271, %v279
    %v282 = vtanh.pop %v281
    %284 = vrot.lane.b32.xlu0 %v282, 64
    %v285 = vpop.permute.xlu0 %284
    %v287 = vmul.f32 %v269, %v285
    %s288 = scalar_lea.vmem [#allocation2], 8
    %v289 = vld [vmem:[%s288] sm:$0xff]
    %291 = vrot.lane.b32.xlu0 %v287, 32
    %v292 = vpop.permute.xlu0 %291
    %v293 = vsel %vm189, %v292, 0
    %295 = vmatprep.subr.mxu0 0.0
    %296 = vmatpush1.msra.mxu0 %v184
    %297 = vmatprep.subr.mxu0 0.0
    %298 = vmatpush1.msra.mxu0 %v185
    %299 = vmatprep.subr.mxu0 0.0
    %300 = vmatpush1.msra.mxu0 %v186
    %301 = vmatprep.subr.mxu0 0.0
    %302 = vmatpush1.msra.mxu0 %v187
    %303 = vmatprep.subr.mxu0 0.0
    %304 = vmatpush1.msra.mxu0 0.0
    %305 = vmatprep.subr.mxu0 0.0
    %306 = vmatpush1.msra.mxu0 0.0
    %307 = vmatprep.subr.mxu0 0.0
    %308 = vmatpush1.msra.mxu0 0.0
    %309 = vmatprep.subr.mxu0 0.0
    %310 = vmatpush1.msra.mxu0 0.0
    %311 = vmatprep.subr.mxu0 0.0
    %312 = vmatpush1.msra.mxu0 0.0
    %313 = vmatprep.subr.mxu0 0.0
    %314 = vmatpush1.msra.mxu0 0.0
    %315 = vmatprep.subr.mxu0 0.0
    %316 = vmatpush1.msra.mxu0 0.0
    %317 = vmatprep.subr.mxu0 0.0
    %318 = vmatpush1.msra.mxu0 0.0
    %319 = vmatprep.subr.mxu0 0.0
    %320 = vmatpush1.msra.mxu0 0.0
    %321 = vmatprep.subr.mxu0 0.0
    %322 = vmatpush1.msra.mxu0 0.0
    %323 = vmatprep.subr.mxu0 0.0
    %324 = vmatpush1.msra.mxu0 0.0
    %325 = vmatprep.subr.mxu0 0.0
    %326 = vmatpush1.msra.mxu0 0.0
    %327 = vmatprep.subr.mxu0 0.0
    %328 = vmatpush1.msra.mxu0 0.0
    %329 = vmatprep.subr.mxu0 0.0
    %330 = vmatpush1.msra.mxu0 0.0
    %331 = vmatprep.subr.mxu0 0.0
    %332 = vmatpush1.msra.mxu0 0.0
    %333 = vmatprep.subr.mxu0 0.0
    %334 = vmatpush1.msra.mxu0 0.0
    %335 = vmatprep.subr.mxu0 0.0
    %336 = vmatpush1.msra.mxu0 0.0
    %337 = vmatprep.subr.mxu0 0.0
    %338 = vmatpush1.msra.mxu0 0.0
    %339 = vmatprep.subr.mxu0 0.0
    %340 = vmatpush1.msra.mxu0 0.0
    %341 = vmatprep.subr.mxu0 0.0
    %342 = vmatpush1.msra.mxu0 0.0
    %343 = vmatprep.subr.mxu0 0.0
    %344 = vmatpush1.msra.mxu0 0.0
    %345 = vmatprep.subr.mxu0 0.0
    %346 = vmatpush1.msra.mxu0 0.0
    %347 = vmatprep.subr.mxu0 0.0
    %348 = vmatpush1.msra.mxu0 0.0
    %349 = vmatprep.subr.mxu0 0.0
    %350 = vmatpush1.msra.mxu0 0.0
    %351 = vmatprep.subr.mxu0 0.0
    %352 = vmatpush1.msra.mxu0 0.0
    %353 = vmatprep.subr.mxu0 0.0
    %354 = vmatpush1.msra.mxu0 0.0
    %355 = vmatprep.subr.mxu0 0.0
    %356 = vmatpush1.msra.mxu0 0.0
    %357 = vmatprep.subr.mxu0 0.0
    %358 = vmatpush1.msra.mxu0 0.0
    %359 = vmatprep.mubr.f32.mxu0 0.0
    %360 = vmatmul.mubr.f32.gmra.mrb[0].mxu0 %v293
    %v361 = vpop.f32.mrb[0].mxu0
    %v362 = vadd.f32 0.0, %v361
    %v363 = vpop.f32.mrb[0].mxu0
    %364 = vdwg.mxu0
    %v365 = vadd.f32 %v289, %v362
    %v366 = vxor.u32 %v365, 2147483648
    %v367 = vmul.f32 %v366, 1.442695
    %v368 = vpow.pop %v367
    %v369 = vadd.f32 %v368, 1.0
    %v370 = vrcp.pop %v369
    %v371 = vmul.f32 1.0, %v370
    %v372 = vtanh.pop %v365
    %v373 = vmul.f32 %v371, %v281
    %375 = vrot.lane.b32.xlu0 %v372, 64
    %v376 = vpop.permute.xlu0 %375
    %v378 = vmul.f32 %v371, %v376
    %380 = vrot.lane.b32.xlu0 %v378, 32
    %v381 = vpop.permute.xlu0 %380
    %v383 = vadd.f32 %v373, %v381
    %v384 = vtanh.pop %v383
    %386 = vrot.lane.b32.xlu0 %v384, 64
    %v387 = vpop.permute.xlu0 %386
    %v389 = vmul.f32 %v371, %v387
    %s390 = scalar_lea.vmem [#allocation2], 16
    %v391 = vld [vmem:[%s390] sm:$0xff]
    %393 = vrot.lane.b32.xlu0 %v389, 32
    %v394 = vpop.permute.xlu0 %393
    %v395 = vsel %vm189, %v394, 0
    %397 = vmatprep.subr.mxu0 0.0
    %398 = vmatpush1.msra.mxu0 %v184
    %399 = vmatprep.subr.mxu0 0.0
    %400 = vmatpush1.msra.mxu0 %v185
    %401 = vmatprep.subr.mxu0 0.0
    %402 = vmatpush1.msra.mxu0 %v186
    %403 = vmatprep.subr.mxu0 0.0
    %404 = vmatpush1.msra.mxu0 %v187
    %405 = vmatprep.subr.mxu0 0.0
    %406 = vmatpush1.msra.mxu0 0.0
    %407 = vmatprep.subr.mxu0 0.0
    %408 = vmatpush1.msra.mxu0 0.0
    %409 = vmatprep.subr.mxu0 0.0
    %410 = vmatpush1.msra.mxu0 0.0
    %411 = vmatprep.subr.mxu0 0.0
    %412 = vmatpush1.msra.mxu0 0.0
    %413 = vmatprep.subr.mxu0 0.0
    %414 = vmatpush1.msra.mxu0 0.0
    %415 = vmatprep.subr.mxu0 0.0
    %416 = vmatpush1.msra.mxu0 0.0
    %417 = vmatprep.subr.mxu0 0.0
    %418 = vmatpush1.msra.mxu0 0.0
    %419 = vmatprep.subr.mxu0 0.0
    %420 = vmatpush1.msra.mxu0 0.0
    %421 = vmatprep.subr.mxu0 0.0
    %422 = vmatpush1.msra.mxu0 0.0
    %423 = vmatprep.subr.mxu0 0.0
    %424 = vmatpush1.msra.mxu0 0.0
    %425 = vmatprep.subr.mxu0 0.0
    %426 = vmatpush1.msra.mxu0 0.0
    %427 = vmatprep.subr.mxu0 0.0
    %428 = vmatpush1.msra.mxu0 0.0
    %429 = vmatprep.subr.mxu0 0.0
    %430 = vmatpush1.msra.mxu0 0.0
    %431 = vmatprep.subr.mxu0 0.0
    %432 = vmatpush1.msra.mxu0 0.0
    %433 = vmatprep.subr.mxu0 0.0
    %434 = vmatpush1.msra.mxu0 0.0
    %435 = vmatprep.subr.mxu0 0.0
    %436 = vmatpush1.msra.mxu0 0.0
    %437 = vmatprep.subr.mxu0 0.0
    %438 = vmatpush1.msra.mxu0 0.0
    %439 = vmatprep.subr.mxu0 0.0
    %440 = vmatpush1.msra.mxu0 0.0
    %441 = vmatprep.subr.mxu0 0.0
    %442 = vmatpush1.msra.mxu0 0.0
    %443 = vmatprep.subr.mxu0 0.0
    %444 = vmatpush1.msra.mxu0 0.0
    %445 = vmatprep.subr.mxu0 0.0
    %446 = vmatpush1.msra.mxu0 0.0
    %447 = vmatprep.subr.mxu0 0.0
    %448 = vmatpush1.msra.mxu0 0.0
    %449 = vmatprep.subr.mxu0 0.0
    %450 = vmatpush1.msra.mxu0 0.0
    %451 = vmatprep.subr.mxu0 0.0
    %452 = vmatpush1.msra.mxu0 0.0
    %453 = vmatprep.subr.mxu0 0.0
    %454 = vmatpush1.msra.mxu0 0.0
    %455 = vmatprep.subr.mxu0 0.0
    %456 = vmatpush1.msra.mxu0 0.0
    %457 = vmatprep.subr.mxu0 0.0
    %458 = vmatpush1.msra.mxu0 0.0
    %459 = vmatprep.subr.mxu0 0.0
    %460 = vmatpush1.msra.mxu0 0.0
    %461 = vmatprep.mubr.f32.mxu0 0.0
    %462 = vmatmul.mubr.f32.gmra.mrb[0].mxu0 %v395
    %v463 = vpop.f32.mrb[0].mxu0
    %v464 = vadd.f32 0.0, %v463
    %v465 = vpop.f32.mrb[0].mxu0
    %466 = vdwg.mxu0
    %v467 = vadd.f32 %v391, %v464
    %v468 = vxor.u32 %v467, 2147483648
    %v469 = vmul.f32 %v468, 1.442695
    %v470 = vpow.pop %v469
    %v471 = vadd.f32 %v470, 1.0
    %v472 = vrcp.pop %v471
    %v473 = vmul.f32 1.0, %v472
    %v474 = vtanh.pop %v467
    %v475 = vmul.f32 %v473, %v383
    %477 = vrot.lane.b32.xlu0 %v474, 64
    %v478 = vpop.permute.xlu0 %477
    %v480 = vmul.f32 %v473, %v478
    %482 = vrot.lane.b32.xlu0 %v480, 32
    %v483 = vpop.permute.xlu0 %482
    %v485 = vadd.f32 %v475, %v483
    %v486 = vtanh.pop %v485
    %488 = vrot.lane.b32.xlu0 %v486, 64
    %v489 = vpop.permute.xlu0 %488
    %v491 = vmul.f32 %v473, %v489
    %s492 = scalar_lea.vmem [#allocation2], 24
    %v493 = vld [vmem:[%s492] sm:$0xff]
    %495 = vrot.lane.b32.xlu0 %v491, 32
    %v496 = vpop.permute.xlu0 %495
    %v497 = vsel %vm189, %v496, 0
    %499 = vmatprep.subr.mxu0 0.0
    %500 = vmatpush1.msra.mxu0 %v184
    %501 = vmatprep.subr.mxu0 0.0
    %502 = vmatpush1.msra.mxu0 %v185
    %503 = vmatprep.subr.mxu0 0.0
    %504 = vmatpush1.msra.mxu0 %v186
    %505 = vmatprep.subr.mxu0 0.0
    %506 = vmatpush1.msra.mxu0 %v187
    %507 = vmatprep.subr.mxu0 0.0
    %508 = vmatpush1.msra.mxu0 0.0
    %509 = vmatprep.subr.mxu0 0.0
    %510 = vmatpush1.msra.mxu0 0.0
    %511 = vmatprep.subr.mxu0 0.0
    %512 = vmatpush1.msra.mxu0 0.0
    %513 = vmatprep.subr.mxu0 0.0
    %514 = vmatpush1.msra.mxu0 0.0
    %515 = vmatprep.subr.mxu0 0.0
    %516 = vmatpush1.msra.mxu0 0.0
    %517 = vmatprep.subr.mxu0 0.0
    %518 = vmatpush1.msra.mxu0 0.0
    %519 = vmatprep.subr.mxu0 0.0
    %520 = vmatpush1.msra.mxu0 0.0
    %521 = vmatprep.subr.mxu0 0.0
    %522 = vmatpush1.msra.mxu0 0.0
    %523 = vmatprep.subr.mxu0 0.0
    %524 = vmatpush1.msra.mxu0 0.0
    %525 = vmatprep.subr.mxu0 0.0
    %526 = vmatpush1.msra.mxu0 0.0
    %527 = vmatprep.subr.mxu0 0.0
    %528 = vmatpush1.msra.mxu0 0.0
    %529 = vmatprep.subr.mxu0 0.0
    %530 = vmatpush1.msra.mxu0 0.0
    %531 = vmatprep.subr.mxu0 0.0
    %532 = vmatpush1.msra.mxu0 0.0
    %533 = vmatprep.subr.mxu0 0.0
    %534 = vmatpush1.msra.mxu0 0.0
    %535 = vmatprep.subr.mxu0 0.0
    %536 = vmatpush1.msra.mxu0 0.0
    %537 = vmatprep.subr.mxu0 0.0
    %538 = vmatpush1.msra.mxu0 0.0
    %539 = vmatprep.subr.mxu0 0.0
    %540 = vmatpush1.msra.mxu0 0.0
    %541 = vmatprep.subr.mxu0 0.0
    %542 = vmatpush1.msra.mxu0 0.0
    %543 = vmatprep.subr.mxu0 0.0
    %544 = vmatpush1.msra.mxu0 0.0
    %545 = vmatprep.subr.mxu0 0.0
    %546 = vmatpush1.msra.mxu0 0.0
    %547 = vmatprep.subr.mxu0 0.0
    %548 = vmatpush1.msra.mxu0 0.0
    %549 = vmatprep.subr.mxu0 0.0
    %550 = vmatpush1.msra.mxu0 0.0
    %551 = vmatprep.subr.mxu0 0.0
    %552 = vmatpush1.msra.mxu0 0.0
    %553 = vmatprep.subr.mxu0 0.0
    %554 = vmatpush1.msra.mxu0 0.0
    %555 = vmatprep.subr.mxu0 0.0
    %556 = vmatpush1.msra.mxu0 0.0
    %557 = vmatprep.subr.mxu0 0.0
    %558 = vmatpush1.msra.mxu0 0.0
    %559 = vmatprep.subr.mxu0 0.0
    %560 = vmatpush1.msra.mxu0 0.0
    %561 = vmatprep.subr.mxu0 0.0
    %562 = vmatpush1.msra.mxu0 0.0
    %563 = vmatprep.mubr.f32.mxu0 0.0
    %564 = vmatmul.mubr.f32.gmra.mrb[0].mxu0 %v497
    %v565 = vpop.f32.mrb[0].mxu0
    %v566 = vadd.f32 0.0, %v565
    %v567 = vpop.f32.mrb[0].mxu0
    %568 = vdwg.mxu0
    %v569 = vadd.f32 %v493, %v566
    %v570 = vxor.u32 %v569, 2147483648
    %v571 = vmul.f32 %v570, 1.442695
    %v572 = vpow.pop %v571
    %v573 = vadd.f32 %v572, 1.0
    %v574 = vrcp.pop %v573
    %v575 = vmul.f32 1.0, %v574
    %v576 = vtanh.pop %v569
    %v577 = vmul.f32 %v575, %v485
    %579 = vrot.lane.b32.xlu0 %v576, 64
    %v580 = vpop.permute.xlu0 %579
    %v582 = vmul.f32 %v575, %v580
    %584 = vrot.lane.b32.xlu0 %v582, 32
    %v585 = vpop.permute.xlu0 %584
    %v587 = vadd.f32 %v577, %v585
    %v588 = vtanh.pop %v587
    %590 = vrot.lane.b32.xlu0 %v588, 64
    %v591 = vpop.permute.xlu0 %590
    %v593 = vmul.f32 %v575, %v591
    %s594 = scalar_lea.vmem [#allocation2], 32
    %v595 = vld [vmem:[%s594] sm:$0xff]
    %597 = vrot.lane.b32.xlu0 %v593, 32
    %v598 = vpop.permute.xlu0 %597
    %v599 = vsel %vm189, %v598, 0
    %601 = vmatprep.subr.mxu0 0.0
    %602 = vmatpush1.msra.mxu0 %v184
    %603 = vmatprep.subr.mxu0 0.0
    %604 = vmatpush1.msra.mxu0 %v185
    %605 = vmatprep.subr.mxu0 0.0
    %606 = vmatpush1.msra.mxu0 %v186
    %607 = vmatprep.subr.mxu0 0.0
    %608 = vmatpush1.msra.mxu0 %v187
    %609 = vmatprep.subr.mxu0 0.0
    %610 = vmatpush1.msra.mxu0 0.0
    %611 = vmatprep.subr.mxu0 0.0
    %612 = vmatpush1.msra.mxu0 0.0
    %613 = vmatprep.subr.mxu0 0.0
    %614 = vmatpush1.msra.mxu0 0.0
    %615 = vmatprep.subr.mxu0 0.0
    %616 = vmatpush1.msra.mxu0 0.0
    %617 = vmatprep.subr.mxu0 0.0
    %618 = vmatpush1.msra.mxu0 0.0
    %619 = vmatprep.subr.mxu0 0.0
    %620 = vmatpush1.msra.mxu0 0.0
    %621 = vmatprep.subr.mxu0 0.0
    %622 = vmatpush1.msra.mxu0 0.0
    %623 = vmatprep.subr.mxu0 0.0
    %624 = vmatpush1.msra.mxu0 0.0
    %625 = vmatprep.subr.mxu0 0.0
    %626 = vmatpush1.msra.mxu0 0.0
    %627 = vmatprep.subr.mxu0 0.0
    %628 = vmatpush1.msra.mxu0 0.0
    %629 = vmatprep.subr.mxu0 0.0
    %630 = vmatpush1.msra.mxu0 0.0
    %631 = vmatprep.subr.mxu0 0.0
    %632 = vmatpush1.msra.mxu0 0.0
    %633 = vmatprep.subr.mxu0 0.0
    %634 = vmatpush1.msra.mxu0 0.0
    %635 = vmatprep.subr.mxu0 0.0
    %636 = vmatpush1.msra.mxu0 0.0
    %637 = vmatprep.subr.mxu0 0.0
    %638 = vmatpush1.msra.mxu0 0.0
    %639 = vmatprep.subr.mxu0 0.0
    %640 = vmatpush1.msra.mxu0 0.0
    %641 = vmatprep.subr.mxu0 0.0
    %642 = vmatpush1.msra.mxu0 0.0
    %643 = vmatprep.subr.mxu0 0.0
    %644 = vmatpush1.msra.mxu0 0.0
    %645 = vmatprep.subr.mxu0 0.0
    %646 = vmatpush1.msra.mxu0 0.0
    %647 = vmatprep.subr.mxu0 0.0
    %648 = vmatpush1.msra.mxu0 0.0
    %649 = vmatprep.subr.mxu0 0.0
    %650 = vmatpush1.msra.mxu0 0.0
    %651 = vmatprep.subr.mxu0 0.0
    %652 = vmatpush1.msra.mxu0 0.0
    %653 = vmatprep.subr.mxu0 0.0
    %654 = vmatpush1.msra.mxu0 0.0
    %655 = vmatprep.subr.mxu0 0.0
    %656 = vmatpush1.msra.mxu0 0.0
    %657 = vmatprep.subr.mxu0 0.0
    %658 = vmatpush1.msra.mxu0 0.0
    %659 = vmatprep.subr.mxu0 0.0
    %660 = vmatpush1.msra.mxu0 0.0
    %661 = vmatprep.subr.mxu0 0.0
    %662 = vmatpush1.msra.mxu0 0.0
    %663 = vmatprep.subr.mxu0 0.0
    %664 = vmatpush1.msra.mxu0 0.0
    %665 = vmatprep.mubr.f32.mxu0 0.0
    %666 = vmatmul.mubr.f32.gmra.mrb[0].mxu0 %v599
    %v667 = vpop.f32.mrb[0].mxu0
    %v668 = vadd.f32 0.0, %v667
    %v669 = vpop.f32.mrb[0].mxu0
    %670 = vdwg.mxu0
    %v671 = vadd.f32 %v595, %v668
    %v672 = vxor.u32 %v671, 2147483648
    %v673 = vmul.f32 %v672, 1.442695
    %v674 = vpow.pop %v673
    %v675 = vadd.f32 %v674, 1.0
    %v676 = vrcp.pop %v675
    %v677 = vmul.f32 1.0, %v676
    %v678 = vtanh.pop %v671
    %v679 = vmul.f32 %v677, %v587
    %681 = vrot.lane.b32.xlu0 %v678, 64
    %v682 = vpop.permute.xlu0 %681
    %v684 = vmul.f32 %v677, %v682
    %686 = vrot.lane.b32.xlu0 %v684, 32
    %v687 = vpop.permute.xlu0 %686
    %v689 = vadd.f32 %v679, %v687
    %v690 = vtanh.pop %v689
    %692 = vrot.lane.b32.xlu0 %v690, 64
    %v693 = vpop.permute.xlu0 %692
    %v695 = vmul.f32 %v677, %v693
    %s696 = scalar_lea.vmem [#allocation2], 40
    %v697 = vld [vmem:[%s696] sm:$0xff]
    %699 = vrot.lane.b32.xlu0 %v695, 32
    %v700 = vpop.permute.xlu0 %699
    %v701 = vsel %vm189, %v700, 0
    %703 = vmatprep.subr.mxu0 0.0
    %704 = vmatpush1.msra.mxu0 %v184
    %705 = vmatprep.subr.mxu0 0.0
    %706 = vmatpush1.msra.mxu0 %v185
    %707 = vmatprep.subr.mxu0 0.0
    %708 = vmatpush1.msra.mxu0 %v186
    %709 = vmatprep.subr.mxu0 0.0
    %710 = vmatpush1.msra.mxu0 %v187
    %711 = vmatprep.subr.mxu0 0.0
    %712 = vmatpush1.msra.mxu0 0.0
    %713 = vmatprep.subr.mxu0 0.0
    %714 = vmatpush1.msra.mxu0 0.0
    %715 = vmatprep.subr.mxu0 0.0
    %716 = vmatpush1.msra.mxu0 0.0
    %717 = vmatprep.subr.mxu0 0.0
    %718 = vmatpush1.msra.mxu0 0.0
    %719 = vmatprep.subr.mxu0 0.0
    %720 = vmatpush1.msra.mxu0 0.0
    %721 = vmatprep.subr.mxu0 0.0
    %722 = vmatpush1.msra.mxu0 0.0
    %723 = vmatprep.subr.mxu0 0.0
    %724 = vmatpush1.msra.mxu0 0.0
    %725 = vmatprep.subr.mxu0 0.0
    %726 = vmatpush1.msra.mxu0 0.0
    %727 = vmatprep.subr.mxu0 0.0
    %728 = vmatpush1.msra.mxu0 0.0
    %729 = vmatprep.subr.mxu0 0.0
    %730 = vmatpush1.msra.mxu0 0.0
    %731 = vmatprep.subr.mxu0 0.0
    %732 = vmatpush1.msra.mxu0 0.0
    %733 = vmatprep.subr.mxu0 0.0
    %734 = vmatpush1.msra.mxu0 0.0
    %735 = vmatprep.subr.mxu0 0.0
    %736 = vmatpush1.msra.mxu0 0.0
    %737 = vmatprep.subr.mxu0 0.0
    %738 = vmatpush1.msra.mxu0 0.0
    %739 = vmatprep.subr.mxu0 0.0
    %740 = vmatpush1.msra.mxu0 0.0
    %741 = vmatprep.subr.mxu0 0.0
    %742 = vmatpush1.msra.mxu0 0.0
    %743 = vmatprep.subr.mxu0 0.0
    %744 = vmatpush1.msra.mxu0 0.0
    %745 = vmatprep.subr.mxu0 0.0
    %746 = vmatpush1.msra.mxu0 0.0
    %747 = vmatprep.subr.mxu0 0.0
    %748 = vmatpush1.msra.mxu0 0.0
    %749 = vmatprep.subr.mxu0 0.0
    %750 = vmatpush1.msra.mxu0 0.0
    %751 = vmatprep.subr.mxu0 0.0
    %752 = vmatpush1.msra.mxu0 0.0
    %753 = vmatprep.subr.mxu0 0.0
    %754 = vmatpush1.msra.mxu0 0.0
    %755 = vmatprep.subr.mxu0 0.0
    %756 = vmatpush1.msra.mxu0 0.0
    %757 = vmatprep.subr.mxu0 0.0
    %758 = vmatpush1.msra.mxu0 0.0
    %759 = vmatprep.subr.mxu0 0.0
    %760 = vmatpush1.msra.mxu0 0.0
    %761 = vmatprep.subr.mxu0 0.0
    %762 = vmatpush1.msra.mxu0 0.0
    %763 = vmatprep.subr.mxu0 0.0
    %764 = vmatpush1.msra.mxu0 0.0
    %765 = vmatprep.subr.mxu0 0.0
    %766 = vmatpush1.msra.mxu0 0.0
    %767 = vmatprep.mubr.f32.mxu0 0.0
    %768 = vmatmul.mubr.f32.gmra.mrb[0].mxu0 %v701
    %v769 = vpop.f32.mrb[0].mxu0
    %v770 = vadd.f32 0.0, %v769
    %v771 = vpop.f32.mrb[0].mxu0
    %772 = vdwg.mxu0
    %v773 = vadd.f32 %v697, %v770
    %v774 = vxor.u32 %v773, 2147483648
    %v775 = vmul.f32 %v774, 1.442695
    %v776 = vpow.pop %v775
    %v777 = vadd.f32 %v776, 1.0
    %v778 = vrcp.pop %v777
    %v779 = vmul.f32 1.0, %v778
    %v780 = vtanh.pop %v773
    %v781 = vmul.f32 %v779, %v689
    %783 = vrot.lane.b32.xlu0 %v780, 64
    %v784 = vpop.permute.xlu0 %783
    %v786 = vmul.f32 %v779, %v784
    %788 = vrot.lane.b32.xlu0 %v786, 32
    %v789 = vpop.permute.xlu0 %788
    %v791 = vadd.f32 %v781, %v789
    %v792 = vtanh.pop %v791
    %794 = vrot.lane.b32.xlu0 %v792, 64
    %v795 = vpop.permute.xlu0 %794
    %v797 = vmul.f32 %v779, %v795
    %s798 = scalar_lea.vmem [#allocation2], 48
    %v799 = vld [vmem:[%s798] sm:$0xff]
    %801 = vrot.lane.b32.xlu0 %v797, 32
    %v802 = vpop.permute.xlu0 %801
    %v803 = vsel %vm189, %v802, 0
    %805 = vmatprep.subr.mxu0 0.0
    %806 = vmatpush1.msra.mxu0 %v184
    %807 = vmatprep.subr.mxu0 0.0
    %808 = vmatpush1.msra.mxu0 %v185
    %809 = vmatprep.subr.mxu0 0.0
    %810 = vmatpush1.msra.mxu0 %v186
    %811 = vmatprep.subr.mxu0 0.0
    %812 = vmatpush1.msra.mxu0 %v187
    %813 = vmatprep.subr.mxu0 0.0
    %814 = vmatpush1.msra.mxu0 0.0
    %815 = vmatprep.subr.mxu0 0.0
    %816 = vmatpush1.msra.mxu0 0.0
    %817 = vmatprep.subr.mxu0 0.0
    %818 = vmatpush1.msra.mxu0 0.0
    %819 = vmatprep.subr.mxu0 0.0
    %820 = vmatpush1.msra.mxu0 0.0
    %821 = vmatprep.subr.mxu0 0.0
    %822 = vmatpush1.msra.mxu0 0.0
    %823 = vmatprep.subr.mxu0 0.0
    %824 = vmatpush1.msra.mxu0 0.0
    %825 = vmatprep.subr.mxu0 0.0
    %826 = vmatpush1.msra.mxu0 0.0
    %827 = vmatprep.subr.mxu0 0.0
    %828 = vmatpush1.msra.mxu0 0.0
    %829 = vmatprep.subr.mxu0 0.0
    %830 = vmatpush1.msra.mxu0 0.0
    %831 = vmatprep.subr.mxu0 0.0
    %832 = vmatpush1.msra.mxu0 0.0
    %833 = vmatprep.subr.mxu0 0.0
    %834 = vmatpush1.msra.mxu0 0.0
    %835 = vmatprep.subr.mxu0 0.0
    %836 = vmatpush1.msra.mxu0 0.0
    %837 = vmatprep.subr.mxu0 0.0
    %838 = vmatpush1.msra.mxu0 0.0
    %839 = vmatprep.subr.mxu0 0.0
    %840 = vmatpush1.msra.mxu0 0.0
    %841 = vmatprep.subr.mxu0 0.0
    %842 = vmatpush1.msra.mxu0 0.0
    %843 = vmatprep.subr.mxu0 0.0
    %844 = vmatpush1.msra.mxu0 0.0
    %845 = vmatprep.subr.mxu0 0.0
    %846 = vmatpush1.msra.mxu0 0.0
    %847 = vmatprep.subr.mxu0 0.0
    %848 = vmatpush1.msra.mxu0 0.0
    %849 = vmatprep.subr.mxu0 0.0
    %850 = vmatpush1.msra.mxu0 0.0
    %851 = vmatprep.subr.mxu0 0.0
    %852 = vmatpush1.msra.mxu0 0.0
    %853 = vmatprep.subr.mxu0 0.0
    %854 = vmatpush1.msra.mxu0 0.0
    %855 = vmatprep.subr.mxu0 0.0
    %856 = vmatpush1.msra.mxu0 0.0
    %857 = vmatprep.subr.mxu0 0.0
    %858 = vmatpush1.msra.mxu0 0.0
    %859 = vmatprep.subr.mxu0 0.0
    %860 = vmatpush1.msra.mxu0 0.0
    %861 = vmatprep.subr.mxu0 0.0
    %862 = vmatpush1.msra.mxu0 0.0
    %863 = vmatprep.subr.mxu0 0.0
    %864 = vmatpush1.msra.mxu0 0.0
    %865 = vmatprep.subr.mxu0 0.0
    %866 = vmatpush1.msra.mxu0 0.0
    %867 = vmatprep.subr.mxu0 0.0
    %868 = vmatpush1.msra.mxu0 0.0
    %869 = vmatprep.mubr.f32.mxu0 0.0
    %870 = vmatmul.mubr.f32.gmra.mrb[0].mxu0 %v803
    %v871 = vpop.f32.mrb[0].mxu0
    %v872 = vadd.f32 0.0, %v871
    %v873 = vpop.f32.mrb[0].mxu0
    %874 = vdwg.mxu0
    %v875 = vadd.f32 %v799, %v872
    %v876 = vxor.u32 %v875, 2147483648
    %v877 = vmul.f32 %v876, 1.442695
    %v878 = vpow.pop %v877
    %v879 = vadd.f32 %v878, 1.0
    %v880 = vrcp.pop %v879
    %v881 = vmul.f32 1.0, %v880
    %v882 = vtanh.pop %v875
    %v883 = vmul.f32 %v881, %v791
    %885 = vrot.lane.b32.xlu0 %v882, 64
    %v886 = vpop.permute.xlu0 %885
    %v888 = vmul.f32 %v881, %v886
    %890 = vrot.lane.b32.xlu0 %v888, 32
    %v891 = vpop.permute.xlu0 %890
    %v893 = vadd.f32 %v883, %v891
    %v894 = vtanh.pop %v893
    %896 = vrot.lane.b32.xlu0 %v894, 64
    %v897 = vpop.permute.xlu0 %896
    %v899 = vmul.f32 %v881, %v897
    %s900 = scalar_lea.vmem [#allocation2], 56
    %v901 = vld [vmem:[%s900] sm:$0xff]
    %903 = vrot.lane.b32.xlu0 %v899, 32
    %v904 = vpop.permute.xlu0 %903
    %v905 = vsel %vm189, %v904, 0
    %907 = vmatprep.subr.mxu0 0.0
    %908 = vmatpush1.msra.mxu0 %v184
    %909 = vmatprep.subr.mxu0 0.0
    %910 = vmatpush1.msra.mxu0 %v185
    %911 = vmatprep.subr.mxu0 0.0
    %912 = vmatpush1.msra.mxu0 %v186
    %913 = vmatprep.subr.mxu0 0.0
    %914 = vmatpush1.msra.mxu0 %v187
    %915 = vmatprep.subr.mxu0 0.0
    %916 = vmatpush1.msra.mxu0 0.0
    %917 = vmatprep.subr.mxu0 0.0
    %918 = vmatpush1.msra.mxu0 0.0
    %919 = vmatprep.subr.mxu0 0.0
    %920 = vmatpush1.msra.mxu0 0.0
    %921 = vmatprep.subr.mxu0 0.0
    %922 = vmatpush1.msra.mxu0 0.0
    %923 = vmatprep.subr.mxu0 0.0
    %924 = vmatpush1.msra.mxu0 0.0
    %925 = vmatprep.subr.mxu0 0.0
    %926 = vmatpush1.msra.mxu0 0.0
    %927 = vmatprep.subr.mxu0 0.0
    %928 = vmatpush1.msra.mxu0 0.0
    %929 = vmatprep.subr.mxu0 0.0
    %930 = vmatpush1.msra.mxu0 0.0
    %931 = vmatprep.subr.mxu0 0.0
    %932 = vmatpush1.msra.mxu0 0.0
    %933 = vmatprep.subr.mxu0 0.0
    %934 = vmatpush1.msra.mxu0 0.0
    %935 = vmatprep.subr.mxu0 0.0
    %936 = vmatpush1.msra.mxu0 0.0
    %937 = vmatprep.subr.mxu0 0.0
    %938 = vmatpush1.msra.mxu0 0.0
    %939 = vmatprep.subr.mxu0 0.0
    %940 = vmatpush1.msra.mxu0 0.0
    %941 = vmatprep.subr.mxu0 0.0
    %942 = vmatpush1.msra.mxu0 0.0
    %943 = vmatprep.subr.mxu0 0.0
    %944 = vmatpush1.msra.mxu0 0.0
    %945 = vmatprep.subr.mxu0 0.0
    %946 = vmatpush1.msra.mxu0 0.0
    %947 = vmatprep.subr.mxu0 0.0
    %948 = vmatpush1.msra.mxu0 0.0
    %949 = vmatprep.subr.mxu0 0.0
    %950 = vmatpush1.msra.mxu0 0.0
    %951 = vmatprep.subr.mxu0 0.0
    %952 = vmatpush1.msra.mxu0 0.0
    %953 = vmatprep.subr.mxu0 0.0
    %954 = vmatpush1.msra.mxu0 0.0
    %955 = vmatprep.subr.mxu0 0.0
    %956 = vmatpush1.msra.mxu0 0.0
    %957 = vmatprep.subr.mxu0 0.0
    %958 = vmatpush1.msra.mxu0 0.0
    %959 = vmatprep.subr.mxu0 0.0
    %960 = vmatpush1.msra.mxu0 0.0
    %961 = vmatprep.subr.mxu0 0.0
    %962 = vmatpush1.msra.mxu0 0.0
    %963 = vmatprep.subr.mxu0 0.0
    %964 = vmatpush1.msra.mxu0 0.0
    %965 = vmatprep.subr.mxu0 0.0
    %966 = vmatpush1.msra.mxu0 0.0
    %967 = vmatprep.subr.mxu0 0.0
    %968 = vmatpush1.msra.mxu0 0.0
    %969 = vmatprep.subr.mxu0 0.0
    %970 = vmatpush1.msra.mxu0 0.0
    %971 = vmatprep.mubr.f32.mxu0 0.0
    %972 = vmatmul.mubr.f32.gmra.mrb[0].mxu0 %v905
    %v973 = vpop.f32.mrb[0].mxu0
    %v974 = vadd.f32 0.0, %v973
    %v975 = vpop.f32.mrb[0].mxu0
    %976 = vdwg.mxu0
    %v977 = vadd.f32 %v901, %v974
    %v978 = vxor.u32 %v977, 2147483648
    %v979 = vmul.f32 %v978, 1.442695
    %v980 = vpow.pop %v979
    %v981 = vadd.f32 %v980, 1.0
    %v982 = vrcp.pop %v981
    %v983 = vmul.f32 1.0, %v982
    %v984 = vtanh.pop %v977
    %v985 = vmul.f32 %v983, %v893
    %987 = vrot.lane.b32.xlu0 %v984, 64
    %v988 = vpop.permute.xlu0 %987
    %v990 = vmul.f32 %v983, %v988
    %992 = vrot.lane.b32.xlu0 %v990, 32
    %v993 = vpop.permute.xlu0 %992
    %v995 = vadd.f32 %v985, %v993
    %v996 = vtanh.pop %v995
    %998 = vrot.lane.b32.xlu0 %v996, 64
    %v999 = vpop.permute.xlu0 %998
    %v1001 = vmul.f32 %v983, %v999
    %s1002 = scalar_lea.vmem [#allocation2], 64
    %v1003 = vld [vmem:[%s1002] sm:$0xff]
    %1005 = vrot.lane.b32.xlu0 %v1001, 32
    %v1006 = vpop.permute.xlu0 %1005
    %v1007 = vsel %vm189, %v1006, 0
    %1009 = vmatprep.subr.mxu0 0.0
    %1010 = vmatpush1.msra.mxu0 %v184
    %1011 = vmatprep.subr.mxu0 0.0
    %1012 = vmatpush1.msra.mxu0 %v185
    %1013 = vmatprep.subr.mxu0 0.0
    %1014 = vmatpush1.msra.mxu0 %v186
    %1015 = vmatprep.subr.mxu0 0.0
    %1016 = vmatpush1.msra.mxu0 %v187
    %1017 = vmatprep.subr.mxu0 0.0
    %1018 = vmatpush1.msra.mxu0 0.0
    %1019 = vmatprep.subr.mxu0 0.0
    %1020 = vmatpush1.msra.mxu0 0.0
    %1021 = vmatprep.subr.mxu0 0.0
    %1022 = vmatpush1.msra.mxu0 0.0
    %1023 = vmatprep.subr.mxu0 0.0
    %1024 = vmatpush1.msra.mxu0 0.0
    %1025 = vmatprep.subr.mxu0 0.0
    %1026 = vmatpush1.msra.mxu0 0.0
    %1027 = vmatprep.subr.mxu0 0.0
    %1028 = vmatpush1.msra.mxu0 0.0
    %1029 = vmatprep.subr.mxu0 0.0
    %1030 = vmatpush1.msra.mxu0 0.0
    %1031 = vmatprep.subr.mxu0 0.0
    %1032 = vmatpush1.msra.mxu0 0.0
    %1033 = vmatprep.subr.mxu0 0.0
    %1034 = vmatpush1.msra.mxu0 0.0
    %1035 = vmatprep.subr.mxu0 0.0
    %1036 = vmatpush1.msra.mxu0 0.0
    %1037 = vmatprep.subr.mxu0 0.0
    %1038 = vmatpush1.msra.mxu0 0.0
    %1039 = vmatprep.subr.mxu0 0.0
    %1040 = vmatpush1.msra.mxu0 0.0
    %1041 = vmatprep.subr.mxu0 0.0
    %1042 = vmatpush1.msra.mxu0 0.0
    %1043 = vmatprep.subr.mxu0 0.0
    %1044 = vmatpush1.msra.mxu0 0.0
    %1045 = vmatprep.subr.mxu0 0.0
    %1046 = vmatpush1.msra.mxu0 0.0
    %1047 = vmatprep.subr.mxu0 0.0
    %1048 = vmatpush1.msra.mxu0 0.0
    %1049 = vmatprep.subr.mxu0 0.0
    %1050 = vmatpush1.msra.mxu0 0.0
    %1051 = vmatprep.subr.mxu0 0.0
    %1052 = vmatpush1.msra.mxu0 0.0
    %1053 = vmatprep.subr.mxu0 0.0
    %1054 = vmatpush1.msra.mxu0 0.0
    %1055 = vmatprep.subr.mxu0 0.0
    %1056 = vmatpush1.msra.mxu0 0.0
    %1057 = vmatprep.subr.mxu0 0.0
    %1058 = vmatpush1.msra.mxu0 0.0
    %1059 = vmatprep.subr.mxu0 0.0
    %1060 = vmatpush1.msra.mxu0 0.0
    %1061 = vmatprep.subr.mxu0 0.0
    %1062 = vmatpush1.msra.mxu0 0.0
    %1063 = vmatprep.subr.mxu0 0.0
    %1064 = vmatpush1.msra.mxu0 0.0
    %1065 = vmatprep.subr.mxu0 0.0
    %1066 = vmatpush1.msra.mxu0 0.0
    %1067 = vmatprep.subr.mxu0 0.0
    %1068 = vmatpush1.msra.mxu0 0.0
    %1069 = vmatprep.subr.mxu0 0.0
    %1070 = vmatpush1.msra.mxu0 0.0
    %1071 = vmatprep.subr.mxu0 0.0
    %1072 = vmatpush1.msra.mxu0 0.0
    %1073 = vmatprep.mubr.f32.mxu0 0.0
    %1074 = vmatmul.mubr.f32.gmra.mrb[0].mxu0 %v1007
    %v1075 = vpop.f32.mrb[0].mxu0
    %v1076 = vadd.f32 0.0, %v1075
    %v1077 = vpop.f32.mrb[0].mxu0
    %1078 = vdwg.mxu0
    %v1079 = vadd.f32 %v1003, %v1076
    %v1080 = vxor.u32 %v1079, 2147483648
    %v1081 = vmul.f32 %v1080, 1.442695
    %v1082 = vpow.pop %v1081
    %v1083 = vadd.f32 %v1082, 1.0
    %v1084 = vrcp.pop %v1083
    %v1085 = vmul.f32 1.0, %v1084
    %v1086 = vtanh.pop %v1079
    %v1087 = vmul.f32 %v1085, %v995
    %1089 = vrot.lane.b32.xlu0 %v1086, 64
    %v1090 = vpop.permute.xlu0 %1089
    %v1092 = vmul.f32 %v1085, %v1090
    %1094 = vrot.lane.b32.xlu0 %v1092, 32
    %v1095 = vpop.permute.xlu0 %1094
    %v1097 = vadd.f32 %v1087, %v1095
    %v1098 = vtanh.pop %v1097
    %1100 = vrot.lane.b32.xlu0 %v1098, 64
    %v1101 = vpop.permute.xlu0 %1100
    %v1103 = vmul.f32 %v1085, %v1101
    %s1104 = scalar_lea.vmem [#allocation2], 72
    %v1105 = vld [vmem:[%s1104] sm:$0xff]
    %1107 = vrot.lane.b32.xlu0 %v1103, 32
    %v1108 = vpop.permute.xlu0 %1107
    %v1109 = vsel %vm189, %v1108, 0
    %1111 = vmatprep.subr.mxu0 0.0
    %1112 = vmatpush1.msra.mxu0 %v184
    %1113 = vmatprep.subr.mxu0 0.0
    %1114 = vmatpush1.msra.mxu0 %v185
    %1115 = vmatprep.subr.mxu0 0.0
    %1116 = vmatpush1.msra.mxu0 %v186
    %1117 = vmatprep.subr.mxu0 0.0
    %1118 = vmatpush1.msra.mxu0 %v187
    %1119 = vmatprep.subr.mxu0 0.0
    %1120 = vmatpush1.msra.mxu0 0.0
    %1121 = vmatprep.subr.mxu0 0.0
    %1122 = vmatpush1.msra.mxu0 0.0
    %1123 = vmatprep.subr.mxu0 0.0
    %1124 = vmatpush1.msra.mxu0 0.0
    %1125 = vmatprep.subr.mxu0 0.0
    %1126 = vmatpush1.msra.mxu0 0.0
    %1127 = vmatprep.subr.mxu0 0.0
    %1128 = vmatpush1.msra.mxu0 0.0
    %1129 = vmatprep.subr.mxu0 0.0
    %1130 = vmatpush1.msra.mxu0 0.0
    %1131 = vmatprep.subr.mxu0 0.0
    %1132 = vmatpush1.msra.mxu0 0.0
    %1133 = vmatprep.subr.mxu0 0.0
    %1134 = vmatpush1.msra.mxu0 0.0
    %1135 = vmatprep.subr.mxu0 0.0
    %1136 = vmatpush1.msra.mxu0 0.0
    %1137 = vmatprep.subr.mxu0 0.0
    %1138 = vmatpush1.msra.mxu0 0.0
    %1139 = vmatprep.subr.mxu0 0.0
    %1140 = vmatpush1.msra.mxu0 0.0
    %1141 = vmatprep.subr.mxu0 0.0
    %1142 = vmatpush1.msra.mxu0 0.0
    %1143 = vmatprep.subr.mxu0 0.0
    %1144 = vmatpush1.msra.mxu0 0.0
    %1145 = vmatprep.subr.mxu0 0.0
    %1146 = vmatpush1.msra.mxu0 0.0
    %1147 = vmatprep.subr.mxu0 0.0
    %1148 = vmatpush1.msra.mxu0 0.0
    %1149 = vmatprep.subr.mxu0 0.0
    %1150 = vmatpush1.msra.mxu0 0.0
    %1151 = vmatprep.subr.mxu0 0.0
    %1152 = vmatpush1.msra.mxu0 0.0
    %1153 = vmatprep.subr.mxu0 0.0
    %1154 = vmatpush1.msra.mxu0 0.0
    %1155 = vmatprep.subr.mxu0 0.0
    %1156 = vmatpush1.msra.mxu0 0.0
    %1157 = vmatprep.subr.mxu0 0.0
    %1158 = vmatpush1.msra.mxu0 0.0
    %1159 = vmatprep.subr.mxu0 0.0
    %1160 = vmatpush1.msra.mxu0 0.0
    %1161 = vmatprep.subr.mxu0 0.0
    %1162 = vmatpush1.msra.mxu0 0.0
    %1163 = vmatprep.subr.mxu0 0.0
    %1164 = vmatpush1.msra.mxu0 0.0
    %1165 = vmatprep.subr.mxu0 0.0
    %1166 = vmatpush1.msra.mxu0 0.0
    %1167 = vmatprep.subr.mxu0 0.0
    %1168 = vmatpush1.msra.mxu0 0.0
    %1169 = vmatprep.subr.mxu0 0.0
    %1170 = vmatpush1.msra.mxu0 0.0
    %1171 = vmatprep.subr.mxu0 0.0
    %1172 = vmatpush1.msra.mxu0 0.0
    %1173 = vmatprep.subr.mxu0 0.0
    %1174 = vmatpush1.msra.mxu0 0.0
    %1175 = vmatprep.mubr.f32.mxu0 0.0
    %1176 = vmatmul.mubr.f32.gmra.mrb[0].mxu0 %v1109
    %v1177 = vpop.f32.mrb[0].mxu0
    %v1178 = vadd.f32 0.0, %v1177
    %v1179 = vpop.f32.mrb[0].mxu0
    %1180 = vdwg.mxu0
    %v1181 = vadd.f32 %v1105, %v1178
    %v1182 = vxor.u32 %v1181, 2147483648
    %v1183 = vmul.f32 %v1182, 1.442695
    %v1184 = vpow.pop %v1183
    %v1185 = vadd.f32 %v1184, 1.0
    %v1186 = vrcp.pop %v1185
    %v1187 = vmul.f32 1.0, %v1186
    %v1188 = vtanh.pop %v1181
    %v1189 = vmul.f32 %v1187, %v1097
    %1191 = vrot.lane.b32.xlu0 %v1188, 64
    %v1192 = vpop.permute.xlu0 %1191
    %v1194 = vmul.f32 %v1187, %v1192
    %1196 = vrot.lane.b32.xlu0 %v1194, 32
    %v1197 = vpop.permute.xlu0 %1196
    %v1199 = vadd.f32 %v1189, %v1197
    %v1200 = vtanh.pop %v1199
    %1202 = vrot.lane.b32.xlu0 %v1200, 64
    %v1203 = vpop.permute.xlu0 %1202
    %v1205 = vmul.f32 %v1187, %v1203
    %s1206 = scalar_lea.vmem [#allocation2], 80
    %v1207 = vld [vmem:[%s1206] sm:$0xff]
    %1209 = vrot.lane.b32.xlu0 %v1205, 32
    %v1210 = vpop.permute.xlu0 %1209
    %v1211 = vsel %vm189, %v1210, 0
    %1213 = vmatprep.subr.mxu0 0.0
    %1214 = vmatpush1.msra.mxu0 %v184
    %1215 = vmatprep.subr.mxu0 0.0
    %1216 = vmatpush1.msra.mxu0 %v185
    %1217 = vmatprep.subr.mxu0 0.0
    %1218 = vmatpush1.msra.mxu0 %v186
    %1219 = vmatprep.subr.mxu0 0.0
    %1220 = vmatpush1.msra.mxu0 %v187
    %1221 = vmatprep.subr.mxu0 0.0
    %1222 = vmatpush1.msra.mxu0 0.0
    %1223 = vmatprep.subr.mxu0 0.0
    %1224 = vmatpush1.msra.mxu0 0.0
    %1225 = vmatprep.subr.mxu0 0.0
    %1226 = vmatpush1.msra.mxu0 0.0
    %1227 = vmatprep.subr.mxu0 0.0
    %1228 = vmatpush1.msra.mxu0 0.0
    %1229 = vmatprep.subr.mxu0 0.0
    %1230 = vmatpush1.msra.mxu0 0.0
    %1231 = vmatprep.subr.mxu0 0.0
    %1232 = vmatpush1.msra.mxu0 0.0
    %1233 = vmatprep.subr.mxu0 0.0
    %1234 = vmatpush1.msra.mxu0 0.0
    %1235 = vmatprep.subr.mxu0 0.0
    %1236 = vmatpush1.msra.mxu0 0.0
    %1237 = vmatprep.subr.mxu0 0.0
    %1238 = vmatpush1.msra.mxu0 0.0
    %1239 = vmatprep.subr.mxu0 0.0
    %1240 = vmatpush1.msra.mxu0 0.0
    %1241 = vmatprep.subr.mxu0 0.0
    %1242 = vmatpush1.msra.mxu0 0.0
    %1243 = vmatprep.subr.mxu0 0.0
    %1244 = vmatpush1.msra.mxu0 0.0
    %1245 = vmatprep.subr.mxu0 0.0
    %1246 = vmatpush1.msra.mxu0 0.0
    %1247 = vmatprep.subr.mxu0 0.0
    %1248 = vmatpush1.msra.mxu0 0.0
    %1249 = vmatprep.subr.mxu0 0.0
    %1250 = vmatpush1.msra.mxu0 0.0
    %1251 = vmatprep.subr.mxu0 0.0
    %1252 = vmatpush1.msra.mxu0 0.0
    %1253 = vmatprep.subr.mxu0 0.0
    %1254 = vmatpush1.msra.mxu0 0.0
    %1255 = vmatprep.subr.mxu0 0.0
    %1256 = vmatpush1.msra.mxu0 0.0
    %1257 = vmatprep.subr.mxu0 0.0
    %1258 = vmatpush1.msra.mxu0 0.0
    %1259 = vmatprep.subr.mxu0 0.0
    %1260 = vmatpush1.msra.mxu0 0.0
    %1261 = vmatprep.subr.mxu0 0.0
    %1262 = vmatpush1.msra.mxu0 0.0
    %1263 = vmatprep.subr.mxu0 0.0
    %1264 = vmatpush1.msra.mxu0 0.0
    %1265 = vmatprep.subr.mxu0 0.0
    %1266 = vmatpush1.msra.mxu0 0.0
    %1267 = vmatprep.subr.mxu0 0.0
    %1268 = vmatpush1.msra.mxu0 0.0
    %1269 = vmatprep.subr.mxu0 0.0
    %1270 = vmatpush1.msra.mxu0 0.0
    %1271 = vmatprep.subr.mxu0 0.0
    %1272 = vmatpush1.msra.mxu0 0.0
    %1273 = vmatprep.subr.mxu0 0.0
    %1274 = vmatpush1.msra.mxu0 0.0
    %1275 = vmatprep.subr.mxu0 0.0
    %1276 = vmatpush1.msra.mxu0 0.0
    %1277 = vmatprep.mubr.f32.mxu0 0.0
    %1278 = vmatmul.mubr.f32.gmra.mrb[0].mxu0 %v1211
    %v1279 = vpop.f32.mrb[0].mxu0
    %v1280 = vadd.f32 0.0, %v1279
    %v1281 = vpop.f32.mrb[0].mxu0
    %1282 = vdwg.mxu0
    %v1283 = vadd.f32 %v1207, %v1280
    %v1284 = vxor.u32 %v1283, 2147483648
    %v1285 = vmul.f32 %v1284, 1.442695
    %v1286 = vpow.pop %v1285
    %v1287 = vadd.f32 %v1286, 1.0
    %v1288 = vrcp.pop %v1287
    %v1289 = vmul.f32 1.0, %v1288
    %v1290 = vtanh.pop %v1283
    %v1291 = vmul.f32 %v1289, %v1199
    %1293 = vrot.lane.b32.xlu0 %v1290, 64
    %v1294 = vpop.permute.xlu0 %1293
    %v1296 = vmul.f32 %v1289, %v1294
    %1298 = vrot.lane.b32.xlu0 %v1296, 32
    %v1299 = vpop.permute.xlu0 %1298
    %v1301 = vadd.f32 %v1291, %v1299
    %v1302 = vtanh.pop %v1301
    %1304 = vrot.lane.b32.xlu0 %v1302, 64
    %v1305 = vpop.permute.xlu0 %1304
    %v1307 = vmul.f32 %v1289, %v1305
    %s1308 = scalar_lea.vmem [#allocation2], 88
    %v1309 = vld [vmem:[%s1308] sm:$0xff]
    %1311 = vrot.lane.b32.xlu0 %v1307, 32
    %v1312 = vpop.permute.xlu0 %1311
    %v1313 = vsel %vm189, %v1312, 0
    %1315 = vmatprep.subr.mxu0 0.0
    %1316 = vmatpush1.msra.mxu0 %v184
    %1317 = vmatprep.subr.mxu0 0.0
    %1318 = vmatpush1.msra.mxu0 %v185
    %1319 = vmatprep.subr.mxu0 0.0
    %1320 = vmatpush1.msra.mxu0 %v186
    %1321 = vmatprep.subr.mxu0 0.0
    %1322 = vmatpush1.msra.mxu0 %v187
    %1323 = vmatprep.subr.mxu0 0.0
    %1324 = vmatpush1.msra.mxu0 0.0
    %1325 = vmatprep.subr.mxu0 0.0
    %1326 = vmatpush1.msra.mxu0 0.0
    %1327 = vmatprep.subr.mxu0 0.0
    %1328 = vmatpush1.msra.mxu0 0.0
    %1329 = vmatprep.subr.mxu0 0.0
    %1330 = vmatpush1.msra.mxu0 0.0
    %1331 = vmatprep.subr.mxu0 0.0
    %1332 = vmatpush1.msra.mxu0 0.0
    %1333 = vmatprep.subr.mxu0 0.0
    %1334 = vmatpush1.msra.mxu0 0.0
    %1335 = vmatprep.subr.mxu0 0.0
    %1336 = vmatpush1.msra.mxu0 0.0
    %1337 = vmatprep.subr.mxu0 0.0
    %1338 = vmatpush1.msra.mxu0 0.0
    %1339 = vmatprep.subr.mxu0 0.0
    %1340 = vmatpush1.msra.mxu0 0.0
    %1341 = vmatprep.subr.mxu0 0.0
    %1342 = vmatpush1.msra.mxu0 0.0
    %1343 = vmatprep.subr.mxu0 0.0
    %1344 = vmatpush1.msra.mxu0 0.0
    %1345 = vmatprep.subr.mxu0 0.0
    %1346 = vmatpush1.msra.mxu0 0.0
    %1347 = vmatprep.subr.mxu0 0.0
    %1348 = vmatpush1.msra.mxu0 0.0
    %1349 = vmatprep.subr.mxu0 0.0
    %1350 = vmatpush1.msra.mxu0 0.0
    %1351 = vmatprep.subr.mxu0 0.0
    %1352 = vmatpush1.msra.mxu0 0.0
    %1353 = vmatprep.subr.mxu0 0.0
    %1354 = vmatpush1.msra.mxu0 0.0
    %1355 = vmatprep.subr.mxu0 0.0
    %1356 = vmatpush1.msra.mxu0 0.0
    %1357 = vmatprep.subr.mxu0 0.0
    %1358 = vmatpush1.msra.mxu0 0.0
    %1359 = vmatprep.subr.mxu0 0.0
    %1360 = vmatpush1.msra.mxu0 0.0
    %1361 = vmatprep.subr.mxu0 0.0
    %1362 = vmatpush1.msra.mxu0 0.0
    %1363 = vmatprep.subr.mxu0 0.0
    %1364 = vmatpush1.msra.mxu0 0.0
    %1365 = vmatprep.subr.mxu0 0.0
    %1366 = vmatpush1.msra.mxu0 0.0
    %1367 = vmatprep.subr.mxu0 0.0
    %1368 = vmatpush1.msra.mxu0 0.0
    %1369 = vmatprep.subr.mxu0 0.0
    %1370 = vmatpush1.msra.mxu0 0.0
    %1371 = vmatprep.subr.mxu0 0.0
    %1372 = vmatpush1.msra.mxu0 0.0
    %1373 = vmatprep.subr.mxu0 0.0
    %1374 = vmatpush1.msra.mxu0 0.0
    %1375 = vmatprep.subr.mxu0 0.0
    %1376 = vmatpush1.msra.mxu0 0.0
    %1377 = vmatprep.subr.mxu0 0.0
    %1378 = vmatpush1.msra.mxu0 0.0
    %1379 = vmatprep.mubr.f32.mxu0 0.0
    %1380 = vmatmul.mubr.f32.gmra.mrb[0].mxu0 %v1313
    %v1381 = vpop.f32.mrb[0].mxu0
    %v1382 = vadd.f32 0.0, %v1381
    %v1383 = vpop.f32.mrb[0].mxu0
    %1384 = vdwg.mxu0
    %v1385 = vadd.f32 %v1309, %v1382
    %v1386 = vxor.u32 %v1385, 2147483648
    %v1387 = vmul.f32 %v1386, 1.442695
    %v1388 = vpow.pop %v1387
    %v1389 = vadd.f32 %v1388, 1.0
    %v1390 = vrcp.pop %v1389
    %v1391 = vmul.f32 1.0, %v1390
    %v1392 = vtanh.pop %v1385
    %v1393 = vmul.f32 %v1391, %v1301
    %1395 = vrot.lane.b32.xlu0 %v1392, 64
    %v1396 = vpop.permute.xlu0 %1395
    %v1398 = vmul.f32 %v1391, %v1396
    %1400 = vrot.lane.b32.xlu0 %v1398, 32
    %v1401 = vpop.permute.xlu0 %1400
    %v1403 = vadd.f32 %v1393, %v1401
    %v1404 = vtanh.pop %v1403
    %1406 = vrot.lane.b32.xlu0 %v1404, 64
    %v1407 = vpop.permute.xlu0 %1406
    %v1409 = vmul.f32 %v1391, %v1407
    %s1410 = scalar_lea.vmem [#allocation2], 96
    %v1411 = vld [vmem:[%s1410] sm:$0xff]
    %1413 = vrot.lane.b32.xlu0 %v1409, 32
    %v1414 = vpop.permute.xlu0 %1413
    %v1415 = vsel %vm189, %v1414, 0
    %1417 = vmatprep.subr.mxu0 0.0
    %1418 = vmatpush1.msra.mxu0 %v184
    %1419 = vmatprep.subr.mxu0 0.0
    %1420 = vmatpush1.msra.mxu0 %v185
    %1421 = vmatprep.subr.mxu0 0.0
    %1422 = vmatpush1.msra.mxu0 %v186
    %1423 = vmatprep.subr.mxu0 0.0
    %1424 = vmatpush1.msra.mxu0 %v187
    %1425 = vmatprep.subr.mxu0 0.0
    %1426 = vmatpush1.msra.mxu0 0.0
    %1427 = vmatprep.subr.mxu0 0.0
    %1428 = vmatpush1.msra.mxu0 0.0
    %1429 = vmatprep.subr.mxu0 0.0
    %1430 = vmatpush1.msra.mxu0 0.0
    %1431 = vmatprep.subr.mxu0 0.0
    %1432 = vmatpush1.msra.mxu0 0.0
    %1433 = vmatprep.subr.mxu0 0.0
    %1434 = vmatpush1.msra.mxu0 0.0
    %1435 = vmatprep.subr.mxu0 0.0
    %1436 = vmatpush1.msra.mxu0 0.0
    %1437 = vmatprep.subr.mxu0 0.0
    %1438 = vmatpush1.msra.mxu0 0.0
    %1439 = vmatprep.subr.mxu0 0.0
    %1440 = vmatpush1.msra.mxu0 0.0
    %1441 = vmatprep.subr.mxu0 0.0
    %1442 = vmatpush1.msra.mxu0 0.0
    %1443 = vmatprep.subr.mxu0 0.0
    %1444 = vmatpush1.msra.mxu0 0.0
    %1445 = vmatprep.subr.mxu0 0.0
    %1446 = vmatpush1.msra.mxu0 0.0
    %1447 = vmatprep.subr.mxu0 0.0
    %1448 = vmatpush1.msra.mxu0 0.0
    %1449 = vmatprep.subr.mxu0 0.0
    %1450 = vmatpush1.msra.mxu0 0.0
    %1451 = vmatprep.subr.mxu0 0.0
    %1452 = vmatpush1.msra.mxu0 0.0
    %1453 = vmatprep.subr.mxu0 0.0
    %1454 = vmatpush1.msra.mxu0 0.0
    %1455 = vmatprep.subr.mxu0 0.0
    %1456 = vmatpush1.msra.mxu0 0.0
    %1457 = vmatprep.subr.mxu0 0.0
    %1458 = vmatpush1.msra.mxu0 0.0
    %1459 = vmatprep.subr.mxu0 0.0
    %1460 = vmatpush1.msra.mxu0 0.0
    %1461 = vmatprep.subr.mxu0 0.0
    %1462 = vmatpush1.msra.mxu0 0.0
    %1463 = vmatprep.subr.mxu0 0.0
    %1464 = vmatpush1.msra.mxu0 0.0
    %1465 = vmatprep.subr.mxu0 0.0
    %1466 = vmatpush1.msra.mxu0 0.0
    %1467 = vmatprep.subr.mxu0 0.0
    %1468 = vmatpush1.msra.mxu0 0.0
    %1469 = vmatprep.subr.mxu0 0.0
    %1470 = vmatpush1.msra.mxu0 0.0
    %1471 = vmatprep.subr.mxu0 0.0
    %1472 = vmatpush1.msra.mxu0 0.0
    %1473 = vmatprep.subr.mxu0 0.0
    %1474 = vmatpush1.msra.mxu0 0.0
    %1475 = vmatprep.subr.mxu0 0.0
    %1476 = vmatpush1.msra.mxu0 0.0
    %1477 = vmatprep.subr.mxu0 0.0
    %1478 = vmatpush1.msra.mxu0 0.0
    %1479 = vmatprep.subr.mxu0 0.0
    %1480 = vmatpush1.msra.mxu0 0.0
    %1481 = vmatprep.mubr.f32.mxu0 0.0
    %1482 = vmatmul.mubr.f32.gmra.mrb[0].mxu0 %v1415
    %v1483 = vpop.f32.mrb[0].mxu0
    %v1484 = vadd.f32 0.0, %v1483
    %v1485 = vpop.f32.mrb[0].mxu0
    %1486 = vdwg.mxu0
    %v1487 = vadd.f32 %v1411, %v1484
    %v1488 = vxor.u32 %v1487, 2147483648
    %v1489 = vmul.f32 %v1488, 1.442695
    %v1490 = vpow.pop %v1489
    %v1491 = vadd.f32 %v1490, 1.0
    %v1492 = vrcp.pop %v1491
    %v1493 = vmul.f32 1.0, %v1492
    %v1494 = vtanh.pop %v1487
    %v1495 = vmul.f32 %v1493, %v1403
    %1497 = vrot.lane.b32.xlu0 %v1494, 64
    %v1498 = vpop.permute.xlu0 %1497
    %v1500 = vmul.f32 %v1493, %v1498
    %1502 = vrot.lane.b32.xlu0 %v1500, 32
    %v1503 = vpop.permute.xlu0 %1502
    %v1505 = vadd.f32 %v1495, %v1503
    %v1506 = vtanh.pop %v1505
    %1508 = vrot.lane.b32.xlu0 %v1506, 64
    %v1509 = vpop.permute.xlu0 %1508
    %v1511 = vmul.f32 %v1493, %v1509
    %s1512 = scalar_lea.vmem [#allocation2], 104
    %v1513 = vld [vmem:[%s1512] sm:$0xff]
    %1515 = vrot.lane.b32.xlu0 %v1511, 32
    %v1516 = vpop.permute.xlu0 %1515
    %v1517 = vsel %vm189, %v1516, 0
    %1519 = vmatprep.subr.mxu0 0.0
    %1520 = vmatpush1.msra.mxu0 %v184
    %1521 = vmatprep.subr.mxu0 0.0
    %1522 = vmatpush1.msra.mxu0 %v185
    %1523 = vmatprep.subr.mxu0 0.0
    %1524 = vmatpush1.msra.mxu0 %v186
    %1525 = vmatprep.subr.mxu0 0.0
    %1526 = vmatpush1.msra.mxu0 %v187
    %1527 = vmatprep.subr.mxu0 0.0
    %1528 = vmatpush1.msra.mxu0 0.0
    %1529 = vmatprep.subr.mxu0 0.0
    %1530 = vmatpush1.msra.mxu0 0.0
    %1531 = vmatprep.subr.mxu0 0.0
    %1532 = vmatpush1.msra.mxu0 0.0
    %1533 = vmatprep.subr.mxu0 0.0
    %1534 = vmatpush1.msra.mxu0 0.0
    %1535 = vmatprep.subr.mxu0 0.0
    %1536 = vmatpush1.msra.mxu0 0.0
    %1537 = vmatprep.subr.mxu0 0.0
    %1538 = vmatpush1.msra.mxu0 0.0
    %1539 = vmatprep.subr.mxu0 0.0
    %1540 = vmatpush1.msra.mxu0 0.0
    %1541 = vmatprep.subr.mxu0 0.0
    %1542 = vmatpush1.msra.mxu0 0.0
    %1543 = vmatprep.subr.mxu0 0.0
    %1544 = vmatpush1.msra.mxu0 0.0
    %1545 = vmatprep.subr.mxu0 0.0
    %1546 = vmatpush1.msra.mxu0 0.0
    %1547 = vmatprep.subr.mxu0 0.0
    %1548 = vmatpush1.msra.mxu0 0.0
    %1549 = vmatprep.subr.mxu0 0.0
    %1550 = vmatpush1.msra.mxu0 0.0
    %1551 = vmatprep.subr.mxu0 0.0
    %1552 = vmatpush1.msra.mxu0 0.0
    %1553 = vmatprep.subr.mxu0 0.0
    %1554 = vmatpush1.msra.mxu0 0.0
    %1555 = vmatprep.subr.mxu0 0.0
    %1556 = vmatpush1.msra.mxu0 0.0
    %1557 = vmatprep.subr.mxu0 0.0
    %1558 = vmatpush1.msra.mxu0 0.0
    %1559 = vmatprep.subr.mxu0 0.0
    %1560 = vmatpush1.msra.mxu0 0.0
    %1561 = vmatprep.subr.mxu0 0.0
    %1562 = vmatpush1.msra.mxu0 0.0
    %1563 = vmatprep.subr.mxu0 0.0
    %1564 = vmatpush1.msra.mxu0 0.0
    %1565 = vmatprep.subr.mxu0 0.0
    %1566 = vmatpush1.msra.mxu0 0.0
    %1567 = vmatprep.subr.mxu0 0.0
    %1568 = vmatpush1.msra.mxu0 0.0
    %1569 = vmatprep.subr.mxu0 0.0
    %1570 = vmatpush1.msra.mxu0 0.0
    %1571 = vmatprep.subr.mxu0 0.0
    %1572 = vmatpush1.msra.mxu0 0.0
    %1573 = vmatprep.subr.mxu0 0.0
    %1574 = vmatpush1.msra.mxu0 0.0
    %1575 = vmatprep.subr.mxu0 0.0
    %1576 = vmatpush1.msra.mxu0 0.0
    %1577 = vmatprep.subr.mxu0 0.0
    %1578 = vmatpush1.msra.mxu0 0.0
    %1579 = vmatprep.subr.mxu0 0.0
    %1580 = vmatpush1.msra.mxu0 0.0
    %1581 = vmatprep.subr.mxu0 0.0
    %1582 = vmatpush1.msra.mxu0 0.0
    %1583 = vmatprep.mubr.f32.mxu0 0.0
    %1584 = vmatmul.mubr.f32.gmra.mrb[0].mxu0 %v1517
    %v1585 = vpop.f32.mrb[0].mxu0
    %v1586 = vadd.f32 0.0, %v1585
    %v1587 = vpop.f32.mrb[0].mxu0
    %1588 = vdwg.mxu0
    %v1589 = vadd.f32 %v1513, %v1586
    %v1590 = vxor.u32 %v1589, 2147483648
    %v1591 = vmul.f32 %v1590, 1.442695
    %v1592 = vpow.pop %v1591
    %v1593 = vadd.f32 %v1592, 1.0
    %v1594 = vrcp.pop %v1593
    %v1595 = vmul.f32 1.0, %v1594
    %v1596 = vtanh.pop %v1589
    %v1597 = vmul.f32 %v1595, %v1505
    %1599 = vrot.lane.b32.xlu0 %v1596, 64
    %v1600 = vpop.permute.xlu0 %1599
    %v1602 = vmul.f32 %v1595, %v1600
    %1604 = vrot.lane.b32.xlu0 %v1602, 32
    %v1605 = vpop.permute.xlu0 %1604
    %v1607 = vadd.f32 %v1597, %v1605
    %v1608 = vtanh.pop %v1607
    %1610 = vrot.lane.b32.xlu0 %v1608, 64
    %v1611 = vpop.permute.xlu0 %1610
    %v1613 = vmul.f32 %v1595, %v1611
    %s1614 = scalar_lea.vmem [#allocation2], 112
    %v1615 = vld [vmem:[%s1614] sm:$0xff]
    %1617 = vrot.lane.b32.xlu0 %v1613, 32
    %v1618 = vpop.permute.xlu0 %1617
    %v1619 = vsel %vm189, %v1618, 0
    %1621 = vmatprep.subr.mxu0 0.0
    %1622 = vmatpush1.msra.mxu0 %v184
    %1623 = vmatprep.subr.mxu0 0.0
    %1624 = vmatpush1.msra.mxu0 %v185
    %1625 = vmatprep.subr.mxu0 0.0
    %1626 = vmatpush1.msra.mxu0 %v186
    %1627 = vmatprep.subr.mxu0 0.0
    %1628 = vmatpush1.msra.mxu0 %v187
    %1629 = vmatprep.subr.mxu0 0.0
    %1630 = vmatpush1.msra.mxu0 0.0
    %1631 = vmatprep.subr.mxu0 0.0
    %1632 = vmatpush1.msra.mxu0 0.0
    %1633 = vmatprep.subr.mxu0 0.0
    %1634 = vmatpush1.msra.mxu0 0.0
    %1635 = vmatprep.subr.mxu0 0.0
    %1636 = vmatpush1.msra.mxu0 0.0
    %1637 = vmatprep.subr.mxu0 0.0
    %1638 = vmatpush1.msra.mxu0 0.0
    %1639 = vmatprep.subr.mxu0 0.0
    %1640 = vmatpush1.msra.mxu0 0.0
    %1641 = vmatprep.subr.mxu0 0.0
    %1642 = vmatpush1.msra.mxu0 0.0
    %1643 = vmatprep.subr.mxu0 0.0
    %1644 = vmatpush1.msra.mxu0 0.0
    %1645 = vmatprep.subr.mxu0 0.0
    %1646 = vmatpush1.msra.mxu0 0.0
    %1647 = vmatprep.subr.mxu0 0.0
    %1648 = vmatpush1.msra.mxu0 0.0
    %1649 = vmatprep.subr.mxu0 0.0
    %1650 = vmatpush1.msra.mxu0 0.0
    %1651 = vmatprep.subr.mxu0 0.0
    %1652 = vmatpush1.msra.mxu0 0.0
    %1653 = vmatprep.subr.mxu0 0.0
    %1654 = vmatpush1.msra.mxu0 0.0
    %1655 = vmatprep.subr.mxu0 0.0
    %1656 = vmatpush1.msra.mxu0 0.0
    %1657 = vmatprep.subr.mxu0 0.0
    %1658 = vmatpush1.msra.mxu0 0.0
    %1659 = vmatprep.subr.mxu0 0.0
    %1660 = vmatpush1.msra.mxu0 0.0
    %1661 = vmatprep.subr.mxu0 0.0
    %1662 = vmatpush1.msra.mxu0 0.0
    %1663 = vmatprep.subr.mxu0 0.0
    %1664 = vmatpush1.msra.mxu0 0.0
    %1665 = vmatprep.subr.mxu0 0.0
    %1666 = vmatpush1.msra.mxu0 0.0
    %1667 = vmatprep.subr.mxu0 0.0
    %1668 = vmatpush1.msra.mxu0 0.0
    %1669 = vmatprep.subr.mxu0 0.0
    %1670 = vmatpush1.msra.mxu0 0.0
    %1671 = vmatprep.subr.mxu0 0.0
    %1672 = vmatpush1.msra.mxu0 0.0
    %1673 = vmatprep.subr.mxu0 0.0
    %1674 = vmatpush1.msra.mxu0 0.0
    %1675 = vmatprep.subr.mxu0 0.0
    %1676 = vmatpush1.msra.mxu0 0.0
    %1677 = vmatprep.subr.mxu0 0.0
    %1678 = vmatpush1.msra.mxu0 0.0
    %1679 = vmatprep.subr.mxu0 0.0
    %1680 = vmatpush1.msra.mxu0 0.0
    %1681 = vmatprep.subr.mxu0 0.0
    %1682 = vmatpush1.msra.mxu0 0.0
    %1683 = vmatprep.subr.mxu0 0.0
    %1684 = vmatpush1.msra.mxu0 0.0
    %1685 = vmatprep.mubr.f32.mxu0 0.0
    %1686 = vmatmul.mubr.f32.gmra.mrb[0].mxu0 %v1619
    %v1687 = vpop.f32.mrb[0].mxu0
    %v1688 = vadd.f32 0.0, %v1687
    %v1689 = vpop.f32.mrb[0].mxu0
    %1690 = vdwg.mxu0
    %v1691 = vadd.f32 %v1615, %v1688
    %v1692 = vxor.u32 %v1691, 2147483648
    %v1693 = vmul.f32 %v1692, 1.442695
    %v1694 = vpow.pop %v1693
    %v1695 = vadd.f32 %v1694, 1.0
    %v1696 = vrcp.pop %v1695
    %v1697 = vmul.f32 1.0, %v1696
    %v1698 = vtanh.pop %v1691
    %v1699 = vmul.f32 %v1697, %v1607
    %1701 = vrot.lane.b32.xlu0 %v1698, 64
    %v1702 = vpop.permute.xlu0 %1701
    %v1704 = vmul.f32 %v1697, %v1702
    %1706 = vrot.lane.b32.xlu0 %v1704, 32
    %v1707 = vpop.permute.xlu0 %1706
    %v1709 = vadd.f32 %v1699, %v1707
    %v1710 = vtanh.pop %v1709
    %1712 = vrot.lane.b32.xlu0 %v1710, 64
    %v1713 = vpop.permute.xlu0 %1712
    %v1715 = vmul.f32 %v1697, %v1713
    %s1716 = scalar_lea.vmem [#allocation2], 120
    %v1717 = vld [vmem:[%s1716] sm:$0xff]
    %1719 = vrot.lane.b32.xlu0 %v1715, 32
    %v1720 = vpop.permute.xlu0 %1719
    %v1721 = vsel %vm189, %v1720, 0
    %1723 = vmatprep.subr.mxu0 0.0
    %1724 = vmatpush1.msra.mxu0 %v184
    %1725 = vmatprep.subr.mxu0 0.0
    %1726 = vmatpush1.msra.mxu0 %v185
    %1727 = vmatprep.subr.mxu0 0.0
    %1728 = vmatpush1.msra.mxu0 %v186
    %1729 = vmatprep.subr.mxu0 0.0
    %1730 = vmatpush1.msra.mxu0 %v187
    %1731 = vmatprep.subr.mxu0 0.0
    %1732 = vmatpush1.msra.mxu0 0.0
    %1733 = vmatprep.subr.mxu0 0.0
    %1734 = vmatpush1.msra.mxu0 0.0
    %1735 = vmatprep.subr.mxu0 0.0
    %1736 = vmatpush1.msra.mxu0 0.0
    %1737 = vmatprep.subr.mxu0 0.0
    %1738 = vmatpush1.msra.mxu0 0.0
    %1739 = vmatprep.subr.mxu0 0.0
    %1740 = vmatpush1.msra.mxu0 0.0
    %1741 = vmatprep.subr.mxu0 0.0
    %1742 = vmatpush1.msra.mxu0 0.0
    %1743 = vmatprep.subr.mxu0 0.0
    %1744 = vmatpush1.msra.mxu0 0.0
    %1745 = vmatprep.subr.mxu0 0.0
    %1746 = vmatpush1.msra.mxu0 0.0
    %1747 = vmatprep.subr.mxu0 0.0
    %1748 = vmatpush1.msra.mxu0 0.0
    %1749 = vmatprep.subr.mxu0 0.0
    %1750 = vmatpush1.msra.mxu0 0.0
    %1751 = vmatprep.subr.mxu0 0.0
    %1752 = vmatpush1.msra.mxu0 0.0
    %1753 = vmatprep.subr.mxu0 0.0
    %1754 = vmatpush1.msra.mxu0 0.0
    %1755 = vmatprep.subr.mxu0 0.0
    %1756 = vmatpush1.msra.mxu0 0.0
    %1757 = vmatprep.subr.mxu0 0.0
    %1758 = vmatpush1.msra.mxu0 0.0
    %1759 = vmatprep.subr.mxu0 0.0
    %1760 = vmatpush1.msra.mxu0 0.0
    %1761 = vmatprep.subr.mxu0 0.0
    %1762 = vmatpush1.msra.mxu0 0.0
    %1763 = vmatprep.subr.mxu0 0.0
    %1764 = vmatpush1.msra.mxu0 0.0
    %1765 = vmatprep.subr.mxu0 0.0
    %1766 = vmatpush1.msra.mxu0 0.0
    %1767 = vmatprep.subr.mxu0 0.0
    %1768 = vmatpush1.msra.mxu0 0.0
    %1769 = vmatprep.subr.mxu0 0.0
    %1770 = vmatpush1.msra.mxu0 0.0
    %1771 = vmatprep.subr.mxu0 0.0
    %1772 = vmatpush1.msra.mxu0 0.0
    %1773 = vmatprep.subr.mxu0 0.0
    %1774 = vmatpush1.msra.mxu0 0.0
    %1775 = vmatprep.subr.mxu0 0.0
    %1776 = vmatpush1.msra.mxu0 0.0
    %1777 = vmatprep.subr.mxu0 0.0
    %1778 = vmatpush1.msra.mxu0 0.0
    %1779 = vmatprep.subr.mxu0 0.0
    %1780 = vmatpush1.msra.mxu0 0.0
    %1781 = vmatprep.subr.mxu0 0.0
    %1782 = vmatpush1.msra.mxu0 0.0
    %1783 = vmatprep.subr.mxu0 0.0
    %1784 = vmatpush1.msra.mxu0 0.0
    %1785 = vmatprep.subr.mxu0 0.0
    %1786 = vmatpush1.msra.mxu0 0.0
    %1787 = vmatprep.mubr.f32.mxu0 0.0
    %1788 = vmatmul.mubr.f32.gmra.mrb[0].mxu0 %v1721
    %v1789 = vpop.f32.mrb[0].mxu0
    %v1790 = vadd.f32 0.0, %v1789
    %v1791 = vpop.f32.mrb[0].mxu0
    %1792 = vdwg.mxu0
    %v1793 = vadd.f32 %v1717, %v1790
    %v1794 = vxor.u32 %v1793, 2147483648
    %v1795 = vmul.f32 %v1794, 1.442695
    %v1796 = vpow.pop %v1795
    %v1797 = vadd.f32 %v1796, 1.0
    %v1798 = vrcp.pop %v1797
    %v1799 = vmul.f32 1.0, %v1798
    %v1800 = vtanh.pop %v1793
    %v1801 = vmul.f32 %v1799, %v1709
    %1803 = vrot.lane.b32.xlu0 %v1800, 64
    %v1804 = vpop.permute.xlu0 %1803
    %v1806 = vmul.f32 %v1799, %v1804
    %1808 = vrot.lane.b32.xlu0 %v1806, 32
    %v1809 = vpop.permute.xlu0 %1808
    %v1811 = vadd.f32 %v1801, %v1809
    %v1812 = vtanh.pop %v1811
    %1814 = vrot.lane.b32.xlu0 %v1812, 64
    %v1815 = vpop.permute.xlu0 %1814
    %v1817 = vmul.f32 %v1799, %v1815
    %v1818 = vld [vmem:[%s4] sm:$0x1]
    %v1819 = vld [vmem:[#allocation3] sm:$0x1]
    %1821 = vset.pattern.permute.xlu0 0
    %1822 = vperm.xlu0 %1821, %v1819
    %v1823 = vpop.permute.xlu0 %1822
    %v1825 = vlaneseq
    %v1826 = vshrl.u32 %v1825, 7
    %v1827 = vsub.s32 0, %v1826
    %v1828 = vrot.slane %v1823, %v1827
    %1830 = vrot.lane.b32.xlu0 %v1817, 32
    %v1831 = vpop.permute.xlu0 %1830
    %v1833 = vsel %vm189, %v1818, 0
    %v1835 = vsel %vm189, %v1831, 0
    %1837 = vmatprep.subr.mxu0 0.0
    %1838 = vmatpush1.xpose.msra.mxu0 %v1835
    %1839 = vmatprep.subr.mxu0 0.0
    %1840 = vmatpush1.xpose.msra.mxu0 0.0
    %1841 = vmatprep.subr.mxu0 0.0
    %1842 = vmatpush1.xpose.msra.mxu0 0.0
    %1843 = vmatprep.subr.mxu0 0.0
    %1844 = vmatpush1.xpose.msra.mxu0 0.0
    %1845 = vmatprep.subr.mxu0 0.0
    %1846 = vmatpush1.xpose.msra.mxu0 0.0
    %1847 = vmatprep.subr.mxu0 0.0
    %1848 = vmatpush1.xpose.msra.mxu0 0.0
    %1849 = vmatprep.subr.mxu0 0.0
    %1850 = vmatpush1.xpose.msra.mxu0 0.0
    %1851 = vmatprep.subr.mxu0 0.0
    %1852 = vmatpush1.xpose.msra.mxu0 0.0
    %1853 = vmatprep.subr.mxu0 0.0
    %1854 = vmatpush1.xpose.msra.mxu0 0.0
    %1855 = vmatprep.subr.mxu0 0.0
    %1856 = vmatpush1.xpose.msra.mxu0 0.0
    %1857 = vmatprep.subr.mxu0 0.0
    %1858 = vmatpush1.xpose.msra.mxu0 0.0
    %1859 = vmatprep.subr.mxu0 0.0
    %1860 = vmatpush1.xpose.msra.mxu0 0.0
    %1861 = vmatprep.subr.mxu0 0.0
    %1862 = vmatpush1.xpose.msra.mxu0 0.0
    %1863 = vmatprep.subr.mxu0 0.0
    %1864 = vmatpush1.xpose.msra.mxu0 0.0
    %1865 = vmatprep.subr.mxu0 0.0
    %1866 = vmatpush1.xpose.msra.mxu0 0.0
    %1867 = vmatprep.subr.mxu0 0.0
    %1868 = vmatpush1.xpose.msra.mxu0 0.0
    %1869 = vmatprep.subr.mxu0 0.0
    %1870 = vmatpush1.xpose.msra.mxu0 0.0
    %1871 = vmatprep.subr.mxu0 0.0
    %1872 = vmatpush1.xpose.msra.mxu0 0.0
    %1873 = vmatprep.subr.mxu0 0.0
    %1874 = vmatpush1.xpose.msra.mxu0 0.0
    %1875 = vmatprep.subr.mxu0 0.0
    %1876 = vmatpush1.xpose.msra.mxu0 0.0
    %1877 = vmatprep.subr.mxu0 0.0
    %1878 = vmatpush1.xpose.msra.mxu0 0.0
    %1879 = vmatprep.subr.mxu0 0.0
    %1880 = vmatpush1.xpose.msra.mxu0 0.0
    %1881 = vmatprep.subr.mxu0 0.0
    %1882 = vmatpush1.xpose.msra.mxu0 0.0
    %1883 = vmatprep.subr.mxu0 0.0
    %1884 = vmatpush1.xpose.msra.mxu0 0.0
    %1885 = vmatprep.subr.mxu0 0.0
    %1886 = vmatpush1.xpose.msra.mxu0 0.0
    %1887 = vmatprep.subr.mxu0 0.0
    %1888 = vmatpush1.xpose.msra.mxu0 0.0
    %1889 = vmatprep.subr.mxu0 0.0
    %1890 = vmatpush1.xpose.msra.mxu0 0.0
    %1891 = vmatprep.subr.mxu0 0.0
    %1892 = vmatpush1.xpose.msra.mxu0 0.0
    %1893 = vmatprep.subr.mxu0 0.0
    %1894 = vmatpush1.xpose.msra.mxu0 0.0
    %1895 = vmatprep.subr.mxu0 0.0
    %1896 = vmatpush1.xpose.msra.mxu0 0.0
    %1897 = vmatprep.subr.mxu0 0.0
    %1898 = vmatpush1.xpose.msra.mxu0 0.0
    %1899 = vmatprep.subr.mxu0 0.0
    %1900 = vmatpush1.xpose.msra.mxu0 0.0
    %1901 = vmatprep.mubr.f32.mxu0 0.0
    %1902 = vmatmul.mubr.f32.gmra.mrb[0].mxu0 %v1833
    %v1903 = vpop.f32.mrb[0].mxu0
    %v1904 = vadd.f32 %v1828, %v1903
    %v1905 = vpop.f32.mrb[0].mxu0
    %1906 = vdwg.mxu0
    %vm1907 = vcmask 57344
    %1908 = vst.msk [vmem:[#allocation4] sm:$0x1] %vm1907, %v1904
    // Predicated region
    $region26: #{tpu_custom_call.1} parent=1 // pred_check
      _
    $region27: #{tpu_custom_call.1} parent=1 // pred_check_branch
      %1910 = sbr.rel (0) target = $region29
    $region28: #{tpu_custom_call.1} parent=1 // pred_region
      %s1912 = ssub.s32 16, 16
      %1913 = vsyncadd [#allocation5], %s1912
      %s1915 = sshll.u32 [#allocation4], 4
      %s1916 = int_to_ptr.vmem [resolvable:$true] %s1915
      %1918 = dma.vmem_to_hbm [thread:$0]  %s1916, 16, %s6, [#allocation5]
    $region29: #{tpu_custom_call.1} parent=1 // pred_fallthru
      _
    // Predicated region
    $region30: #{tpu_custom_call.1} parent=1 // pred_check
      _
    $region31: #{tpu_custom_call.1} parent=1 // pred_check_branch
      %1920 = sbr.rel (0) target = $region33
    $region32: #{tpu_custom_call.1} parent=1 // pred_region
      %1921 = dma.done [#allocation5], 16
    $region33: #{tpu_custom_call.1} parent=1 // pred_fallthru
      _
    %1922 = vsyncpa [#allocation5], 1

</llo_original>
